<compile_context>
chip_gen: v7x
topology: tpu7x:2x2x1
jax: 0.10.0
libtpu: 0.0.40
codegen_flags: <defaults>
</compile_context>

<pallas_src>
import functools

import jax
import jax.numpy as jnp
from jax.experimental import pallas as pl
from jax.experimental.pallas import tpu as pltpu


def _block_kernel(x_ref, ln1g_ref, ln1b_ref,
                  wqkv_ref, wo_ref, bo_ref,
                  ln2g_ref, ln2b_ref,
                  w1_ref, b1_ref, w2_ref, b2_ref,
                  out_ref, *, n_head):
    eps = 1e-5
    x = x_ref[...]                                     # (T, C) f32 (batch squeezed)
    T, C = x.shape
    D = C // n_head

    # ---- LayerNorm 1 (f32) ----
    mu = jnp.mean(x, axis=-1, keepdims=True)
    var = jnp.mean((x - mu) ** 2, axis=-1, keepdims=True)
    h1 = (x - mu) * jax.lax.rsqrt(var + eps) * ln1g_ref[0] + ln1b_ref[0]
    h1b = h1.astype(jnp.bfloat16)

    # ---- Fused QKV projection: one (T,C)x(C,3C) bf16 matmul, f32 accumulate ----
    # 1/sqrt(D) is already baked into the Q columns of wqkv (host side).
    qkv = jnp.dot(h1b, wqkv_ref[...], preferred_element_type=jnp.float32)   # (T, 3C)

    # ---- Head split: one reshape + leading-axis transpose -> (3H, T, D) bf16 ----
    heads = jnp.swapaxes(qkv.astype(jnp.bfloat16).reshape(T, 3 * n_head, D), 0, 1)
    qh = heads[:n_head]                                # (H, T, D), already scaled
    kh = heads[n_head:2 * n_head]
    vh = heads[2 * n_head:]

    # ---- Batched attention over all heads (no mask, dropout=0) ----
    s = jnp.einsum('htd,hsd->hts', qh, kh,
                   preferred_element_type=jnp.float32)                      # (H, T, T)
    s = s - jnp.max(s, axis=-1, keepdims=True)
    e = jnp.exp(s)                                                          # f32 (v5e-safe)
    p = e * pl.reciprocal(jnp.sum(e, axis=-1, keepdims=True), approx=True)
    o = jnp.einsum('hts,hsd->htd', p.astype(jnp.bfloat16), vh,
                   preferred_element_type=jnp.float32)                      # (H, T, D)

    # ---- Merge heads to a lane-dense (T, C) slab; Wo contraction on the MXU ----
    oc = jnp.swapaxes(o.astype(jnp.bfloat16), 0, 1).reshape(T, C)           # (T, C) bf16
    sa = jnp.dot(oc, wo_ref[...], preferred_element_type=jnp.float32) + bo_ref[0]
    x1 = x + sa                                                             # residual 1

    # ---- LayerNorm 2 (f32) ----
    mu2 = jnp.mean(x1, axis=-1, keepdims=True)
    var2 = jnp.mean((x1 - mu2) ** 2, axis=-1, keepdims=True)
    h2 = (x1 - mu2) * jax.lax.rsqrt(var2 + eps) * ln2g_ref[0] + ln2b_ref[0]

    # ---- FeedForward: Linear(C,4C) -> ReLU -> Linear(4C,C), dropout=0 ----
    f = jnp.dot(h2.astype(jnp.bfloat16), w1_ref[...],
                preferred_element_type=jnp.float32) + b1_ref[0]
    f = jnp.maximum(f, 0.0)
    f = jnp.dot(f.astype(jnp.bfloat16), w2_ref[...],
                preferred_element_type=jnp.float32) + b2_ref[0]

    out_ref[...] = x1 + f                                                   # residual 2


def transformer_block(x, params, *, n_head):
    """x: (B, T, C) float32. params: dict of weights. Returns (B, T, C) float32."""
    B, T, C = x.shape
    D = C // n_head
    H4 = 4 * C

    # Fuse Q/K/V into one (C, 3C) weight; fold the 1/sqrt(D) scale into Q.
    scale = float(D) ** -0.5
    wq_scaled = (params["wq"].astype(jnp.float32) * scale).astype(jnp.bfloat16)
    wqkv = jnp.concatenate([wq_scaled, params["wk"], params["wv"]], axis=1)

    # Grid-invariant blocks: single-buffered (no need for double buffering).
    def invariant(shape):
        return pl.BlockSpec(shape, lambda b: (0,) * len(shape),
                            pipeline_mode=pl.Buffered(1))

    # Per-generation VMEM limit: ~75% of physical, capped (v7x=48MiB, v5e/v6e=96MiB).
    try:
        vmem_cap = pltpu.get_tpu_info().vmem_capacity_bytes
    except Exception:
        vmem_cap = 64 * 1024 * 1024
    vmem_limit = min(int(vmem_cap * 3 // 4), 110 * 1024 * 1024)

    kernel = functools.partial(_block_kernel, n_head=n_head)

    return pl.pallas_call(
        kernel,
        out_shape=jax.ShapeDtypeStruct((B, T, C), jnp.float32),
        grid_spec=pltpu.PrefetchScalarGridSpec(
            num_scalar_prefetch=0,
            grid=(B,),
            in_specs=[
                pl.BlockSpec((pl.Squeezed(), T, C), lambda b: (b, 0, 0)),  # x
                invariant((1, C)),                   # ln1 gamma (f32)
                invariant((1, C)),                   # ln1 beta  (f32)
                invariant((C, 3 * C)),               # fused Wqkv (bf16, Q pre-scaled)
                invariant((C, C)),                   # Wo (bf16)
                invariant((1, C)),                   # bo (f32)
                invariant((1, C)),                   # ln2 gamma (f32)
                invariant((1, C)),                   # ln2 beta  (f32)
                invariant((C, H4)),                  # W1 (bf16)
                invariant((1, H4)),                  # b1 (f32)
                invariant((H4, C)),                  # W2 (bf16)
                invariant((1, C)),                   # b2 (f32)
            ],
            out_specs=pl.BlockSpec((pl.Squeezed(), T, C), lambda b: (b, 0, 0)),
        ),
        compiler_params=pltpu.CompilerParams(
            dimension_semantics=("parallel",),
            vmem_limit_bytes=vmem_limit),
    )(x, params["ln1_g"], params["ln1_b"],
      wqkv, params["wo"], params["bo"],
      params["ln2_g"], params["ln2_b"],
      params["w1"], params["b1"], params["w2"], params["b2"])


def reference_block(x, params, *, n_head):
    """Pure-JAX f32 reference mirroring the PyTorch Block.forward exactly
    (bf16 weights are upcast so only in-kernel activation rounding differs)."""
    eps = 1e-5
    C = x.shape[-1]
    D = C // n_head
    f32 = lambda a: a.astype(jnp.float32)

    def ln(z, g, b):
        mu = jnp.mean(z, axis=-1, keepdims=True)
        var = jnp.mean((z - mu) ** 2, axis=-1, keepdims=True)
        return (z - mu) / jnp.sqrt(var + eps) * g[0] + b[0]

    h1 = ln(x, params["ln1_g"], params["ln1_b"])
    q = h1 @ f32(params["wq"])
    k = h1 @ f32(params["wk"])
    v = h1 @ f32(params["wv"])
    outs = []
    for h in range(n_head):
        sl = slice(h * D, (h + 1) * D)
        wei = q[..., sl] @ jnp.swapaxes(k[..., sl], -2, -1) * D ** -0.5
        wei = jax.nn.softmax(wei, axis=-1)
        outs.append(wei @ v[..., sl])
    att = jnp.concatenate(outs, axis=-1)
    x1 = x + att @ f32(params["wo"]) + params["bo"][0]

    h2 = ln(x1, params["ln2_g"], params["ln2_b"])
    f = jnp.maximum(h2 @ f32(params["w1"]) + params["b1"][0], 0.0)
    f = f @ f32(params["w2"]) + params["b2"][0]
    return x1 + f


def make_params(key, n_embd):
    C, H4 = n_embd, 4 * n_embd
    keys = jax.random.split(key, 8)
    u = lambda k, shape, fan_in: jax.random.uniform(
        k, shape, jnp.float32, -1.0 / (fan_in ** 0.5), 1.0 / (fan_in ** 0.5))
    bf = lambda a: a.astype(jnp.bfloat16)
    return {
        "ln1_g": jnp.ones((1, C), jnp.float32),
        "ln1_b": jnp.zeros((1, C), jnp.float32),
        "wq": bf(u(keys[0], (C, C), C)),
        "wk": bf(u(keys[1], (C, C), C)),
        "wv": bf(u(keys[2], (C, C), C)),
        "wo": bf(u(keys[3], (C, C), C)),
        "bo": u(keys[4], (1, C), C),
        "ln2_g": jnp.ones((1, C), jnp.float32),
        "ln2_b": jnp.zeros((1, C), jnp.float32),
        "w1": bf(u(keys[5], (C, H4), C)),
        "b1": u(keys[6], (1, H4), C),
        "w2": bf(u(keys[7], (H4, C), H4)),
        "b2": jnp.zeros((1, C), jnp.float32),
    }


if __name__ == "__main__":
    # Small demo shapes (block_size=8, n_embd=32, 4 heads). For perf work use
    # T a multiple of 16 and C a multiple of 128 so vregs/MXU are unmasked.
    B, T, C, n_head = 2, 8, 32, 4

    key = jax.random.PRNGKey(0)
    k_x, k_p = jax.random.split(key)
    x = jax.random.normal(k_x, (B, T, C), jnp.float32)
    params = make_params(k_p, C)

    out = transformer_block(x, params, n_head=n_head)
    out = jax.block_until_ready(out)

    ref = reference_block(x, params, n_head=n_head)
    assert out.shape == (B, T, C)
    # bf16 weights/activations + approx reciprocal inside the kernel -> loosen
    # the tolerance vs. the f32 reference.
    assert jnp.allclose(out, ref, atol=5e-2, rtol=5e-2), (
        float(jnp.max(jnp.abs(out - ref))))

    print("KERNEL_OK")
</pallas_src>

<mosaic_0001>
module attributes {stable_mosaic.version = 11 : i64} {
  func.func @_block_kernel(%arg0: i32, %arg1: memref<1x8x32xf32, #tpu.memory_space<vmem>>, %arg2: memref<1x32xf32, #tpu.memory_space<vmem>>, %arg3: memref<1x32xf32, #tpu.memory_space<vmem>>, %arg4: memref<32x96xbf16, #tpu.memory_space<vmem>>, %arg5: memref<32x32xbf16, #tpu.memory_space<vmem>>, %arg6: memref<1x32xf32, #tpu.memory_space<vmem>>, %arg7: memref<1x32xf32, #tpu.memory_space<vmem>>, %arg8: memref<1x32xf32, #tpu.memory_space<vmem>>, %arg9: memref<32x128xbf16, #tpu.memory_space<vmem>>, %arg10: memref<1x128xf32, #tpu.memory_space<vmem>>, %arg11: memref<128x32xbf16, #tpu.memory_space<vmem>>, %arg12: memref<1x32xf32, #tpu.memory_space<vmem>>, %arg13: memref<1x8x32xf32, #tpu.memory_space<vmem>>) attributes {dimension_semantics = [#tpu.dimension_semantics<parallel>], iteration_bounds = array<i64: 2>, scalar_prefetch = 0 : i64, scratch_operands = 0 : i64, tpu.core_type = #tpu.core_type<tc>, window_params = [{transform_indices = @transform_0, window_bounds = array<i64: 1, 8, 32>}, {pipeline_mode = #tpu.pipeline_mode<synchronous>, transform_indices = @transform_1, window_bounds = array<i64: 1, 32>}, {pipeline_mode = #tpu.pipeline_mode<synchronous>, transform_indices = @transform_2, window_bounds = array<i64: 1, 32>}, {pipeline_mode = #tpu.pipeline_mode<synchronous>, transform_indices = @transform_3, window_bounds = array<i64: 32, 96>}, {pipeline_mode = #tpu.pipeline_mode<synchronous>, transform_indices = @transform_4, window_bounds = array<i64: 32, 32>}, {pipeline_mode = #tpu.pipeline_mode<synchronous>, transform_indices = @transform_5, window_bounds = array<i64: 1, 32>}, {pipeline_mode = #tpu.pipeline_mode<synchronous>, transform_indices = @transform_6, window_bounds = array<i64: 1, 32>}, {pipeline_mode = #tpu.pipeline_mode<synchronous>, transform_indices = @transform_7, window_bounds = array<i64: 1, 32>}, {pipeline_mode = #tpu.pipeline_mode<synchronous>, transform_indices = @transform_8, window_bounds = array<i64: 32, 128>}, {pipeline_mode = #tpu.pipeline_mode<synchronous>, transform_indices = @transform_9, window_bounds = array<i64: 1, 128>}, {pipeline_mode = #tpu.pipeline_mode<synchronous>, transform_indices = @transform_10, window_bounds = array<i64: 128, 32>}, {pipeline_mode = #tpu.pipeline_mode<synchronous>, transform_indices = @transform_11, window_bounds = array<i64: 1, 32>}, {transform_indices = @transform_12, window_bounds = array<i64: 1, 8, 32>}]} {
    %c0 = arith.constant 0 : index
    %c0_0 = arith.constant 0 : index
    %c0_1 = arith.constant 0 : index
    %0 = vector.load %arg1[%c0, %c0_0, %c0_1] : memref<1x8x32xf32, #tpu.memory_space<vmem>>, vector<1x8x32xf32>
    %1 = vector.shape_cast %0 : vector<1x8x32xf32> to vector<8x32xf32>
    %cst = arith.constant dense<0.000000e+00> : vector<8xf32>
    %2 = vector.multi_reduction <add>, %1, %cst [1] : vector<8x32xf32> to vector<8xf32>
    %3 = vector.shape_cast %2 : vector<8xf32> to vector<8x1xf32>
    %cst_2 = arith.constant 3.200000e+01 : f32
    %4 = vector.broadcast %cst_2 : f32 to vector<8x1xf32>
    %5 = arith.divf %3, %4 : vector<8x1xf32>
    %6 = vector.broadcast %5 : vector<8x1xf32> to vector<8x32xf32>
    %7 = arith.subf %1, %6 : vector<8x32xf32>
    %8 = arith.mulf %7, %7 : vector<8x32xf32>
    %cst_3 = arith.constant dense<0.000000e+00> : vector<8xf32>
    %9 = vector.multi_reduction <add>, %8, %cst_3 [1] : vector<8x32xf32> to vector<8xf32>
    %10 = vector.shape_cast %9 : vector<8xf32> to vector<8x1xf32>
    %cst_4 = arith.constant 3.200000e+01 : f32
    %11 = vector.broadcast %cst_4 : f32 to vector<8x1xf32>
    %12 = arith.divf %10, %11 : vector<8x1xf32>
    %13 = vector.broadcast %5 : vector<8x1xf32> to vector<8x32xf32>
    %14 = arith.subf %1, %13 : vector<8x32xf32>
    %cst_5 = arith.constant 9.99999974E-6 : f32
    %15 = vector.broadcast %cst_5 : f32 to vector<8x1xf32>
    %16 = arith.addf %12, %15 : vector<8x1xf32>
    %17 = math.rsqrt %16 : vector<8x1xf32>
    %18 = vector.broadcast %17 : vector<8x1xf32> to vector<8x32xf32>
    %19 = arith.mulf %14, %18 : vector<8x32xf32>
    %c0_6 = arith.constant 0 : index
    %c0_7 = arith.constant 0 : index
    %20 = vector.load %arg2[%c0_6, %c0_7] : memref<1x32xf32, #tpu.memory_space<vmem>>, vector<1x32xf32>
    %21 = vector.shape_cast %20 : vector<1x32xf32> to vector<32xf32>
    %22 = vector.shape_cast %21 : vector<32xf32> to vector<1x32xf32>
    %23 = vector.broadcast %22 : vector<1x32xf32> to vector<8x32xf32>
    %24 = arith.mulf %19, %23 : vector<8x32xf32>
    %c0_8 = arith.constant 0 : index
    %c0_9 = arith.constant 0 : index
    %25 = vector.load %arg3[%c0_8, %c0_9] : memref<1x32xf32, #tpu.memory_space<vmem>>, vector<1x32xf32>
    %26 = vector.shape_cast %25 : vector<1x32xf32> to vector<32xf32>
    %27 = vector.shape_cast %26 : vector<32xf32> to vector<1x32xf32>
    %28 = vector.broadcast %27 : vector<1x32xf32> to vector<8x32xf32>
    %29 = arith.addf %24, %28 : vector<8x32xf32>
    %30 = arith.truncf %29 : vector<8x32xf32> to vector<8x32xbf16>
    %c0_10 = arith.constant 0 : index
    %c0_11 = arith.constant 0 : index
    %31 = vector.load %arg4[%c0_10, %c0_11] : memref<32x96xbf16, #tpu.memory_space<vmem>>, vector<32x96xbf16>
    %cst_12 = arith.constant dense<0.000000e+00> : vector<8x96xf32>
    %32 = tpu.matmul %30, %31, %cst_12 {dimension_numbers = #tpu.dot_dimension_numbers<[1], [0], [0], [1], [0, 0, 1, 1], [], []>} : vector<8x32xbf16>, vector<32x96xbf16>, vector<8x96xf32> -> vector<8x96xf32>
    %33 = arith.truncf %32 : vector<8x96xf32> to vector<8x96xbf16>
    %34 = vector.shape_cast %33 : vector<8x96xbf16> to vector<8x12x8xbf16>
    %35 = tpu.transpose %34, [1, 0, 2] : vector<8x12x8xbf16> -> vector<12x8x8xbf16>
    %36 = vector.extract_strided_slice %35 {offsets = [0, 0, 0], sizes = [4, 8, 8], strides = [1, 1, 1]} : vector<12x8x8xbf16> to vector<4x8x8xbf16>
    %37 = vector.extract_strided_slice %35 {offsets = [4, 0, 0], sizes = [4, 8, 8], strides = [1, 1, 1]} : vector<12x8x8xbf16> to vector<4x8x8xbf16>
    %38 = vector.extract_strided_slice %35 {offsets = [8, 0, 0], sizes = [4, 8, 8], strides = [1, 1, 1]} : vector<12x8x8xbf16> to vector<4x8x8xbf16>
    "tpu.trace_start"() <{level = 10 : i32, message = "htd,hsd->hts"}> : () -> ()
    %cst_13 = arith.constant dense<0.000000e+00> : vector<4x8x8xf32>
    %39 = tpu.matmul %36, %37, %cst_13 {dimension_numbers = #tpu.dot_dimension_numbers<[2], [2], [1], [1], [0, 0, 0, 1, 1, 1], [0], [0]>} : vector<4x8x8xbf16>, vector<4x8x8xbf16>, vector<4x8x8xf32> -> vector<4x8x8xf32>
    "tpu.trace_stop"() : () -> ()
    %cst_14 = arith.constant dense<0xFF800000> : vector<4x8xf32>
    %40 = vector.multi_reduction <maximumf>, %39, %cst_14 [2] : vector<4x8x8xf32> to vector<4x8xf32>
    %41 = vector.shape_cast %40 : vector<4x8xf32> to vector<4x8x1xf32>
    %42 = vector.broadcast %41 : vector<4x8x1xf32> to vector<4x8x8xf32>
    %43 = arith.subf %39, %42 : vector<4x8x8xf32>
    %44 = math.exp %43 : vector<4x8x8xf32>
    %cst_15 = arith.constant dense<0.000000e+00> : vector<4x8xf32>
    %45 = vector.multi_reduction <add>, %44, %cst_15 [2] : vector<4x8x8xf32> to vector<4x8xf32>
    %46 = vector.shape_cast %45 : vector<4x8xf32> to vector<4x8x1xf32>
    %47 = tpu.reciprocal %46 {approx = true} : vector<4x8x1xf32> -> vector<4x8x1xf32>
    %48 = vector.broadcast %47 : vector<4x8x1xf32> to vector<4x8x8xf32>
    %49 = arith.mulf %44, %48 : vector<4x8x8xf32>
    %50 = arith.truncf %49 : vector<4x8x8xf32> to vector<4x8x8xbf16>
    "tpu.trace_start"() <{level = 10 : i32, message = "hts,hsd->htd"}> : () -> ()
    %cst_16 = arith.constant dense<0.000000e+00> : vector<4x8x8xf32>
    %51 = tpu.matmul %50, %38, %cst_16 {dimension_numbers = #tpu.dot_dimension_numbers<[2], [1], [1], [2], [0, 0, 0, 1, 1, 2], [0], [0]>} : vector<4x8x8xbf16>, vector<4x8x8xbf16>, vector<4x8x8xf32> -> vector<4x8x8xf32>
    "tpu.trace_stop"() : () -> ()
    %52 = arith.truncf %51 : vector<4x8x8xf32> to vector<4x8x8xbf16>
    %53 = tpu.transpose %52, [1, 0, 2] : vector<4x8x8xbf16> -> vector<8x4x8xbf16>
    %54 = vector.shape_cast %53 : vector<8x4x8xbf16> to vector<8x32xbf16>
    %c0_17 = arith.constant 0 : index
    %c0_18 = arith.constant 0 : index
    %55 = vector.load %arg5[%c0_17, %c0_18] : memref<32x32xbf16, #tpu.memory_space<vmem>>, vector<32x32xbf16>
    %cst_19 = arith.constant dense<0.000000e+00> : vector<8x32xf32>
    %56 = tpu.matmul %54, %55, %cst_19 {dimension_numbers = #tpu.dot_dimension_numbers<[1], [0], [0], [1], [0, 0, 1, 1], [], []>} : vector<8x32xbf16>, vector<32x32xbf16>, vector<8x32xf32> -> vector<8x32xf32>
    %c0_20 = arith.constant 0 : index
    %c0_21 = arith.constant 0 : index
    %57 = vector.load %arg6[%c0_20, %c0_21] : memref<1x32xf32, #tpu.memory_space<vmem>>, vector<1x32xf32>
    %58 = vector.shape_cast %57 : vector<1x32xf32> to vector<32xf32>
    %59 = vector.shape_cast %58 : vector<32xf32> to vector<1x32xf32>
    %60 = vector.broadcast %59 : vector<1x32xf32> to vector<8x32xf32>
    %61 = arith.addf %56, %60 : vector<8x32xf32>
    %62 = arith.addf %1, %61 : vector<8x32xf32>
    %cst_22 = arith.constant dense<0.000000e+00> : vector<8xf32>
    %63 = vector.multi_reduction <add>, %62, %cst_22 [1] : vector<8x32xf32> to vector<8xf32>
    %64 = vector.shape_cast %63 : vector<8xf32> to vector<8x1xf32>
    %cst_23 = arith.constant 3.200000e+01 : f32
    %65 = vector.broadcast %cst_23 : f32 to vector<8x1xf32>
    %66 = arith.divf %64, %65 : vector<8x1xf32>
    %67 = vector.broadcast %66 : vector<8x1xf32> to vector<8x32xf32>
    %68 = arith.subf %62, %67 : vector<8x32xf32>
    %69 = arith.mulf %68, %68 : vector<8x32xf32>
    %cst_24 = arith.constant dense<0.000000e+00> : vector<8xf32>
    %70 = vector.multi_reduction <add>, %69, %cst_24 [1] : vector<8x32xf32> to vector<8xf32>
    %71 = vector.shape_cast %70 : vector<8xf32> to vector<8x1xf32>
    %cst_25 = arith.constant 3.200000e+01 : f32
    %72 = vector.broadcast %cst_25 : f32 to vector<8x1xf32>
    %73 = arith.divf %71, %72 : vector<8x1xf32>
    %74 = vector.broadcast %66 : vector<8x1xf32> to vector<8x32xf32>
    %75 = arith.subf %62, %74 : vector<8x32xf32>
    %cst_26 = arith.constant 9.99999974E-6 : f32
    %76 = vector.broadcast %cst_26 : f32 to vector<8x1xf32>
    %77 = arith.addf %73, %76 : vector<8x1xf32>
    %78 = math.rsqrt %77 : vector<8x1xf32>
    %79 = vector.broadcast %78 : vector<8x1xf32> to vector<8x32xf32>
    %80 = arith.mulf %75, %79 : vector<8x32xf32>
    %c0_27 = arith.constant 0 : index
    %c0_28 = arith.constant 0 : index
    %81 = vector.load %arg7[%c0_27, %c0_28] : memref<1x32xf32, #tpu.memory_space<vmem>>, vector<1x32xf32>
    %82 = vector.shape_cast %81 : vector<1x32xf32> to vector<32xf32>
    %83 = vector.shape_cast %82 : vector<32xf32> to vector<1x32xf32>
    %84 = vector.broadcast %83 : vector<1x32xf32> to vector<8x32xf32>
    %85 = arith.mulf %80, %84 : vector<8x32xf32>
    %c0_29 = arith.constant 0 : index
    %c0_30 = arith.constant 0 : index
    %86 = vector.load %arg8[%c0_29, %c0_30] : memref<1x32xf32, #tpu.memory_space<vmem>>, vector<1x32xf32>
    %87 = vector.shape_cast %86 : vector<1x32xf32> to vector<32xf32>
    %88 = vector.shape_cast %87 : vector<32xf32> to vector<1x32xf32>
    %89 = vector.broadcast %88 : vector<1x32xf32> to vector<8x32xf32>
    %90 = arith.addf %85, %89 : vector<8x32xf32>
    %91 = arith.truncf %90 : vector<8x32xf32> to vector<8x32xbf16>
    %c0_31 = arith.constant 0 : index
    %c0_32 = arith.constant 0 : index
    %92 = vector.load %arg9[%c0_31, %c0_32] : memref<32x128xbf16, #tpu.memory_space<vmem>>, vector<32x128xbf16>
    %cst_33 = arith.constant dense<0.000000e+00> : vector<8x128xf32>
    %93 = tpu.matmul %91, %92, %cst_33 {dimension_numbers = #tpu.dot_dimension_numbers<[1], [0], [0], [1], [0, 0, 1, 1], [], []>} : vector<8x32xbf16>, vector<32x128xbf16>, vector<8x128xf32> -> vector<8x128xf32>
    %c0_34 = arith.constant 0 : index
    %c0_35 = arith.constant 0 : index
    %94 = vector.load %arg10[%c0_34, %c0_35] : memref<1x128xf32, #tpu.memory_space<vmem>>, vector<1x128xf32>
    %95 = vector.shape_cast %94 : vector<1x128xf32> to vector<128xf32>
    %96 = vector.shape_cast %95 : vector<128xf32> to vector<1x128xf32>
    %97 = vector.broadcast %96 : vector<1x128xf32> to vector<8x128xf32>
    %98 = arith.addf %93, %97 : vector<8x128xf32>
    %cst_36 = arith.constant 0.000000e+00 : f32
    %99 = vector.broadcast %cst_36 : f32 to vector<8x128xf32>
    %100 = arith.maximumf %98, %99 : vector<8x128xf32>
    %101 = arith.truncf %100 : vector<8x128xf32> to vector<8x128xbf16>
    %c0_37 = arith.constant 0 : index
    %c0_38 = arith.constant 0 : index
    %102 = vector.load %arg11[%c0_37, %c0_38] : memref<128x32xbf16, #tpu.memory_space<vmem>>, vector<128x32xbf16>
    %cst_39 = arith.constant dense<0.000000e+00> : vector<8x32xf32>
    %103 = tpu.matmul %101, %102, %cst_39 {dimension_numbers = #tpu.dot_dimension_numbers<[1], [0], [0], [1], [0, 0, 1, 1], [], []>} : vector<8x128xbf16>, vector<128x32xbf16>, vector<8x32xf32> -> vector<8x32xf32>
    %c0_40 = arith.constant 0 : index
    %c0_41 = arith.constant 0 : index
    %104 = vector.load %arg12[%c0_40, %c0_41] : memref<1x32xf32, #tpu.memory_space<vmem>>, vector<1x32xf32>
    %105 = vector.shape_cast %104 : vector<1x32xf32> to vector<32xf32>
    %106 = vector.shape_cast %105 : vector<32xf32> to vector<1x32xf32>
    %107 = vector.broadcast %106 : vector<1x32xf32> to vector<8x32xf32>
    %108 = arith.addf %103, %107 : vector<8x32xf32>
    %109 = arith.addf %62, %108 : vector<8x32xf32>
    %c0_42 = arith.constant 0 : index
    %c0_43 = arith.constant 0 : index
    %c0_44 = arith.constant 0 : index
    %110 = vector.load %arg13[%c0_42, %c0_43, %c0_44] : memref<1x8x32xf32, #tpu.memory_space<vmem>>, vector<1x8x32xf32>
    %111 = vector.shape_cast %110 : vector<1x8x32xf32> to vector<8x32xf32>
    %112 = vector.shape_cast %109 : vector<8x32xf32> to vector<1x8x32xf32>
    tpu.vector_store %arg13[%c0_42, %c0_43, %c0_44], %112 {strides = array<i32>} : memref<1x8x32xf32, #tpu.memory_space<vmem>>, vector<1x8x32xf32>,
    return
  }
  func.func @transform_0(%arg0: i32) -> (i32, i32, i32) {
    %c0_i32 = arith.constant 0 : i32
    %c0_i32_0 = arith.constant 0 : i32
    %c0_i32_1 = arith.constant 0 : i32
    return %arg0, %c0_i32, %c0_i32_0 : i32, i32, i32
  }
  func.func @transform_1(%arg0: i32) -> (i32, i32) {
    %c0_i32 = arith.constant 0 : i32
    %c0_i32_0 = arith.constant 0 : i32
    %c0_i32_1 = arith.constant 0 : i32
    return %c0_i32, %c0_i32_0 : i32, i32
  }
  func.func @transform_2(%arg0: i32) -> (i32, i32) {
    %c0_i32 = arith.constant 0 : i32
    %c0_i32_0 = arith.constant 0 : i32
    %c0_i32_1 = arith.constant 0 : i32
    return %c0_i32, %c0_i32_0 : i32, i32
  }
  func.func @transform_3(%arg0: i32) -> (i32, i32) {
    %c0_i32 = arith.constant 0 : i32
    %c0_i32_0 = arith.constant 0 : i32
    %c0_i32_1 = arith.constant 0 : i32
    return %c0_i32, %c0_i32_0 : i32, i32
  }
  func.func @transform_4(%arg0: i32) -> (i32, i32) {
    %c0_i32 = arith.constant 0 : i32
    %c0_i32_0 = arith.constant 0 : i32
    %c0_i32_1 = arith.constant 0 : i32
    return %c0_i32, %c0_i32_0 : i32, i32
  }
  func.func @transform_5(%arg0: i32) -> (i32, i32) {
    %c0_i32 = arith.constant 0 : i32
    %c0_i32_0 = arith.constant 0 : i32
    %c0_i32_1 = arith.constant 0 : i32
    return %c0_i32, %c0_i32_0 : i32, i32
  }
  func.func @transform_6(%arg0: i32) -> (i32, i32) {
    %c0_i32 = arith.constant 0 : i32
    %c0_i32_0 = arith.constant 0 : i32
    %c0_i32_1 = arith.constant 0 : i32
    return %c0_i32, %c0_i32_0 : i32, i32
  }
  func.func @transform_7(%arg0: i32) -> (i32, i32) {
    %c0_i32 = arith.constant 0 : i32
    %c0_i32_0 = arith.constant 0 : i32
    %c0_i32_1 = arith.constant 0 : i32
    return %c0_i32, %c0_i32_0 : i32, i32
  }
  func.func @transform_8(%arg0: i32) -> (i32, i32) {
    %c0_i32 = arith.constant 0 : i32
    %c0_i32_0 = arith.constant 0 : i32
    %c0_i32_1 = arith.constant 0 : i32
    return %c0_i32, %c0_i32_0 : i32, i32
  }
  func.func @transform_9(%arg0: i32) -> (i32, i32) {
    %c0_i32 = arith.constant 0 : i32
    %c0_i32_0 = arith.constant 0 : i32
    %c0_i32_1 = arith.constant 0 : i32
    return %c0_i32, %c0_i32_0 : i32, i32
  }
  func.func @transform_10(%arg0: i32) -> (i32, i32) {
    %c0_i32 = arith.constant 0 : i32
    %c0_i32_0 = arith.constant 0 : i32
    %c0_i32_1 = arith.constant 0 : i32
    return %c0_i32, %c0_i32_0 : i32, i32
  }
  func.func @transform_11(%arg0: i32) -> (i32, i32) {
    %c0_i32 = arith.constant 0 : i32
    %c0_i32_0 = arith.constant 0 : i32
    %c0_i32_1 = arith.constant 0 : i32
    return %c0_i32, %c0_i32_0 : i32, i32
  }
  func.func @transform_12(%arg0: i32) -> (i32, i32, i32) {
    %c0_i32 = arith.constant 0 : i32
    %c0_i32_0 = arith.constant 0 : i32
    %c0_i32_1 = arith.constant 0 : i32
    return %arg0, %c0_i32, %c0_i32_0 : i32, i32, i32
  }
}

</mosaic_0001>

<llo_original>
// kernel: tpu_custom_call.1
$region0: #{tpu_custom_call.1}
  #allocation0 [shape = 'u32[]', space=smem, size = 0x4, offset = 0x4, fixed_abs, tag = 'smem constant byte address 0x4 - core index']
  #allocation1 [shape = 'u32[144,128]{1,0:T(1,128)}', space=vmem, size = 0x12000, scoped, tag = 'internal scratch']
  %s0 = inlined_call_operand.vmem [shape: f32[2,8,32], index: 0, kind: input, shape index: {}]
  %s1 = inlined_call_operand.vmem [shape: f32[1,32], index: 1, kind: input, shape index: {}]
  %s2 = inlined_call_operand.vmem [shape: f32[1,32], index: 2, kind: input, shape index: {}]
  %s3 = inlined_call_operand.vmem [shape: bf16[32,96], index: 3, kind: input, shape index: {}]
  %s4 = inlined_call_operand.vmem [shape: bf16[32,32], index: 4, kind: input, shape index: {}]
  %s5 = inlined_call_operand.vmem [shape: f32[1,32], index: 5, kind: input, shape index: {}]
  %s6 = inlined_call_operand.vmem [shape: f32[1,32], index: 6, kind: input, shape index: {}]
  %s7 = inlined_call_operand.vmem [shape: f32[1,32], index: 7, kind: input, shape index: {}]
  %s8 = inlined_call_operand.vmem [shape: bf16[32,128], index: 8, kind: input, shape index: {}]
  %s9 = inlined_call_operand.vmem [shape: f32[1,128], index: 9, kind: input, shape index: {}]
  %s10 = inlined_call_operand.vmem [shape: bf16[128,32], index: 10, kind: input, shape index: {}]
  %s11 = inlined_call_operand.vmem [shape: f32[1,32], index: 11, kind: input, shape index: {}]
  %s12 = inlined_call_operand.hbm [shape: f32[2,8,32], index: 12, kind: output, shape index: {}]
  %s13 = sld [smem:[#allocation0]]
  $region81: #{tpu_custom_call.1} parent=0
    _
  %s15 = ssub.s32 1, %s13
  %s16 = scalar_select 0, %s15, %s13
  $region1: #{tpu_custom_call.1} parent=0
    #allocation2 [shape = 'u8[8192]{0}', space=vmem, size = 0x2000, scoped, tag = 'output window, operand 0']
    #allocation3 [shape = 's32[2]{0}', space=sflag, size = 0x8, scoped, tag = 'scoped memory for tpu_custom_call.1']
    %17 = vsyncpa [#allocation3], 0
    %s18 = scalar_lea.sflag [#allocation3], 1
    %19 = vsyncpa %s18, 0
    loop: start=0, step=1, limit=4
    $region2: #{tpu_custom_call.1} parent=1 // loop_pre_header
      _
    $region3: #{tpu_custom_call.1} parent=1 // loop_header
      %s21 = sphi 0, %s25
      %p22 = scmp.ge.s32.totalorder %s21, 4
      %s31 = sphi 0, %s33
      %s34 = sphi 0, %s31
      %s35 = sphi 0, %s34
      %s51 = sphi 0, %s35
      %s55 = sphi 0, %s55
      %s57 = sphi 0, %s55
      %s58 = sphi 0, %s57
      %s72 = sphi 0, %s58
      %s76 = sphi 0, %s76
      %s78 = sphi 0, %s76
      %s79 = sphi 0, %s78
      %s93 = sphi 0, %s79
      %s97 = sphi 0, %s97
      %s99 = sphi 0, %s97
      %s100 = sphi 0, %s99
      %s114 = sphi 0, %s100
      %s118 = sphi 0, %s118
      %s120 = sphi 0, %s118
      %s121 = sphi 0, %s120
      %s135 = sphi 0, %s121
      %s139 = sphi 0, %s139
      %s141 = sphi 0, %s139
      %s142 = sphi 0, %s141
      %s156 = sphi 0, %s142
      %s160 = sphi 0, %s160
      %s162 = sphi 0, %s160
      %s163 = sphi 0, %s162
      %s177 = sphi 0, %s163
      %s181 = sphi 0, %s181
      %s183 = sphi 0, %s181
      %s184 = sphi 0, %s183
      %s198 = sphi 0, %s184
      %s202 = sphi 0, %s202
      %s204 = sphi 0, %s202
      %s205 = sphi 0, %s204
      %s219 = sphi 0, %s205
      %s223 = sphi 0, %s223
      %s225 = sphi 0, %s223
      %s226 = sphi 0, %s225
      %s240 = sphi 0, %s226
      %s244 = sphi 0, %s244
      %s246 = sphi 0, %s244
      %s247 = sphi 0, %s246
      %s261 = sphi 0, %s247
      %s265 = sphi 0, %s265
      %s267 = sphi 0, %s265
      %s268 = sphi 0, %s267
      %s282 = sphi 0, %s268
      %s288 = sphi 0, %s290
      %s291 = sphi 0, %s288
      %s292 = sphi 0, %s291
      %s308 = sphi 0, %s292
    $region4: #{tpu_custom_call.1} parent=1 // loop_header_branch
      %24 = sbr.rel (%p22) target = $region8
    $region5: #{tpu_custom_call.1} parent=1 // loop_body
      %s26 = ssub.s32 %s21, 1
      %s27 = ssub.s32 %s21, 2
      %s28 = sadd.s32 %s21, 1
      %s29 = ssub.s32 %s21, %s28
      %p30 = scmp.eq.s32.totalorder %s29, 0
      %s32 = sadd.s32 %s31, 1
      %s33 = scalar_select %p30, %s31, %s32
      %p36 = pneg %p30
      %p37 = scmp.eq.s32.totalorder %s21, 1
      %p38 = por %p36, %p37
      %p39 = scmp.ne.s32.totalorder %s31, %s34
      %p40 = scmp.eq.s32.totalorder %s21, 0
      %p41 = por %p39, %p40
      %p42 = scmp.ne.s32.totalorder %s31, %s34
      %p43 = scmp.eq.s32.totalorder %s26, 1
      %p44 = por %p42, %p43
      %p45 = scmp.ne.s32.totalorder %s34, %s35
      %p46 = scmp.eq.s32.totalorder %s26, 0
      %p47 = por %p45, %p46
      %p48 = scmp.ne.s32.totalorder %s34, %s35
      %p49 = scmp.eq.s32.totalorder %s27, 1
      %p50 = por %p48, %p49
      %p52 = scmp.ne.s32.totalorder %s35, %s51
      %p53 = scmp.eq.s32.totalorder %s27, 0
      %p54 = por %p52, %p53
      %s56 = sadd.s32 %s55, 1
      %p59 = scmp.eq.s32.totalorder %s21, 1
      %p60 = scmp.ne.s32.totalorder %s55, %s57
      %p61 = scmp.eq.s32.totalorder %s21, 0
      %p62 = por %p60, %p61
      %p63 = scmp.ne.s32.totalorder %s55, %s57
      %p64 = scmp.eq.s32.totalorder %s26, 1
      %p65 = por %p63, %p64
      %p66 = scmp.ne.s32.totalorder %s57, %s58
      %p67 = scmp.eq.s32.totalorder %s26, 0
      %p68 = por %p66, %p67
      %p69 = scmp.ne.s32.totalorder %s57, %s58
      %p70 = scmp.eq.s32.totalorder %s27, 1
      %p71 = por %p69, %p70
      %p73 = scmp.ne.s32.totalorder %s58, %s72
      %p74 = scmp.eq.s32.totalorder %s27, 0
      %p75 = por %p73, %p74
      %s77 = sadd.s32 %s76, 1
      %p80 = scmp.eq.s32.totalorder %s21, 1
      %p81 = scmp.ne.s32.totalorder %s76, %s78
      %p82 = scmp.eq.s32.totalorder %s21, 0
      %p83 = por %p81, %p82
      %p84 = scmp.ne.s32.totalorder %s76, %s78
      %p85 = scmp.eq.s32.totalorder %s26, 1
      %p86 = por %p84, %p85
      %p87 = scmp.ne.s32.totalorder %s78, %s79
      %p88 = scmp.eq.s32.totalorder %s26, 0
      %p89 = por %p87, %p88
      %p90 = scmp.ne.s32.totalorder %s78, %s79
      %p91 = scmp.eq.s32.totalorder %s27, 1
      %p92 = por %p90, %p91
      %p94 = scmp.ne.s32.totalorder %s79, %s93
      %p95 = scmp.eq.s32.totalorder %s27, 0
      %p96 = por %p94, %p95
      %s98 = sadd.s32 %s97, 1
      %p101 = scmp.eq.s32.totalorder %s21, 1
      %p102 = scmp.ne.s32.totalorder %s97, %s99
      %p103 = scmp.eq.s32.totalorder %s21, 0
      %p104 = por %p102, %p103
      %p105 = scmp.ne.s32.totalorder %s97, %s99
      %p106 = scmp.eq.s32.totalorder %s26, 1
      %p107 = por %p105, %p106
      %p108 = scmp.ne.s32.totalorder %s99, %s100
      %p109 = scmp.eq.s32.totalorder %s26, 0
      %p110 = por %p108, %p109
      %p111 = scmp.ne.s32.totalorder %s99, %s100
      %p112 = scmp.eq.s32.totalorder %s27, 1
      %p113 = por %p111, %p112
      %p115 = scmp.ne.s32.totalorder %s100, %s114
      %p116 = scmp.eq.s32.totalorder %s27, 0
      %p117 = por %p115, %p116
      %s119 = sadd.s32 %s118, 1
      %p122 = scmp.eq.s32.totalorder %s21, 1
      %p123 = scmp.ne.s32.totalorder %s118, %s120
      %p124 = scmp.eq.s32.totalorder %s21, 0
      %p125 = por %p123, %p124
      %p126 = scmp.ne.s32.totalorder %s118, %s120
      %p127 = scmp.eq.s32.totalorder %s26, 1
      %p128 = por %p126, %p127
      %p129 = scmp.ne.s32.totalorder %s120, %s121
      %p130 = scmp.eq.s32.totalorder %s26, 0
      %p131 = por %p129, %p130
      %p132 = scmp.ne.s32.totalorder %s120, %s121
      %p133 = scmp.eq.s32.totalorder %s27, 1
      %p134 = por %p132, %p133
      %p136 = scmp.ne.s32.totalorder %s121, %s135
      %p137 = scmp.eq.s32.totalorder %s27, 0
      %p138 = por %p136, %p137
      %s140 = sadd.s32 %s139, 1
      %p143 = scmp.eq.s32.totalorder %s21, 1
      %p144 = scmp.ne.s32.totalorder %s139, %s141
      %p145 = scmp.eq.s32.totalorder %s21, 0
      %p146 = por %p144, %p145
      %p147 = scmp.ne.s32.totalorder %s139, %s141
      %p148 = scmp.eq.s32.totalorder %s26, 1
      %p149 = por %p147, %p148
      %p150 = scmp.ne.s32.totalorder %s141, %s142
      %p151 = scmp.eq.s32.totalorder %s26, 0
      %p152 = por %p150, %p151
      %p153 = scmp.ne.s32.totalorder %s141, %s142
      %p154 = scmp.eq.s32.totalorder %s27, 1
      %p155 = por %p153, %p154
      %p157 = scmp.ne.s32.totalorder %s142, %s156
      %p158 = scmp.eq.s32.totalorder %s27, 0
      %p159 = por %p157, %p158
      %s161 = sadd.s32 %s160, 1
      %p164 = scmp.eq.s32.totalorder %s21, 1
      %p165 = scmp.ne.s32.totalorder %s160, %s162
      %p166 = scmp.eq.s32.totalorder %s21, 0
      %p167 = por %p165, %p166
      %p168 = scmp.ne.s32.totalorder %s160, %s162
      %p169 = scmp.eq.s32.totalorder %s26, 1
      %p170 = por %p168, %p169
      %p171 = scmp.ne.s32.totalorder %s162, %s163
      %p172 = scmp.eq.s32.totalorder %s26, 0
      %p173 = por %p171, %p172
      %p174 = scmp.ne.s32.totalorder %s162, %s163
      %p175 = scmp.eq.s32.totalorder %s27, 1
      %p176 = por %p174, %p175
      %p178 = scmp.ne.s32.totalorder %s163, %s177
      %p179 = scmp.eq.s32.totalorder %s27, 0
      %p180 = por %p178, %p179
      %s182 = sadd.s32 %s181, 1
      %p185 = scmp.eq.s32.totalorder %s21, 1
      %p186 = scmp.ne.s32.totalorder %s181, %s183
      %p187 = scmp.eq.s32.totalorder %s21, 0
      %p188 = por %p186, %p187
      %p189 = scmp.ne.s32.totalorder %s181, %s183
      %p190 = scmp.eq.s32.totalorder %s26, 1
      %p191 = por %p189, %p190
      %p192 = scmp.ne.s32.totalorder %s183, %s184
      %p193 = scmp.eq.s32.totalorder %s26, 0
      %p194 = por %p192, %p193
      %p195 = scmp.ne.s32.totalorder %s183, %s184
      %p196 = scmp.eq.s32.totalorder %s27, 1
      %p197 = por %p195, %p196
      %p199 = scmp.ne.s32.totalorder %s184, %s198
      %p200 = scmp.eq.s32.totalorder %s27, 0
      %p201 = por %p199, %p200
      %s203 = sadd.s32 %s202, 1
      %p206 = scmp.eq.s32.totalorder %s21, 1
      %p207 = scmp.ne.s32.totalorder %s202, %s204
      %p208 = scmp.eq.s32.totalorder %s21, 0
      %p209 = por %p207, %p208
      %p210 = scmp.ne.s32.totalorder %s202, %s204
      %p211 = scmp.eq.s32.totalorder %s26, 1
      %p212 = por %p210, %p211
      %p213 = scmp.ne.s32.totalorder %s204, %s205
      %p214 = scmp.eq.s32.totalorder %s26, 0
      %p215 = por %p213, %p214
      %p216 = scmp.ne.s32.totalorder %s204, %s205
      %p217 = scmp.eq.s32.totalorder %s27, 1
      %p218 = por %p216, %p217
      %p220 = scmp.ne.s32.totalorder %s205, %s219
      %p221 = scmp.eq.s32.totalorder %s27, 0
      %p222 = por %p220, %p221
      %s224 = sadd.s32 %s223, 1
      %p227 = scmp.eq.s32.totalorder %s21, 1
      %p228 = scmp.ne.s32.totalorder %s223, %s225
      %p229 = scmp.eq.s32.totalorder %s21, 0
      %p230 = por %p228, %p229
      %p231 = scmp.ne.s32.totalorder %s223, %s225
      %p232 = scmp.eq.s32.totalorder %s26, 1
      %p233 = por %p231, %p232
      %p234 = scmp.ne.s32.totalorder %s225, %s226
      %p235 = scmp.eq.s32.totalorder %s26, 0
      %p236 = por %p234, %p235
      %p237 = scmp.ne.s32.totalorder %s225, %s226
      %p238 = scmp.eq.s32.totalorder %s27, 1
      %p239 = por %p237, %p238
      %p241 = scmp.ne.s32.totalorder %s226, %s240
      %p242 = scmp.eq.s32.totalorder %s27, 0
      %p243 = por %p241, %p242
      %s245 = sadd.s32 %s244, 1
      %p248 = scmp.eq.s32.totalorder %s21, 1
      %p249 = scmp.ne.s32.totalorder %s244, %s246
      %p250 = scmp.eq.s32.totalorder %s21, 0
      %p251 = por %p249, %p250
      %p252 = scmp.ne.s32.totalorder %s244, %s246
      %p253 = scmp.eq.s32.totalorder %s26, 1
      %p254 = por %p252, %p253
      %p255 = scmp.ne.s32.totalorder %s246, %s247
      %p256 = scmp.eq.s32.totalorder %s26, 0
      %p257 = por %p255, %p256
      %p258 = scmp.ne.s32.totalorder %s246, %s247
      %p259 = scmp.eq.s32.totalorder %s27, 1
      %p260 = por %p258, %p259
      %p262 = scmp.ne.s32.totalorder %s247, %s261
      %p263 = scmp.eq.s32.totalorder %s27, 0
      %p264 = por %p262, %p263
      %s266 = sadd.s32 %s265, 1
      %p269 = scmp.eq.s32.totalorder %s21, 1
      %p270 = scmp.ne.s32.totalorder %s265, %s267
      %p271 = scmp.eq.s32.totalorder %s21, 0
      %p272 = por %p270, %p271
      %p273 = scmp.ne.s32.totalorder %s265, %s267
      %p274 = scmp.eq.s32.totalorder %s26, 1
      %p275 = por %p273, %p274
      %p276 = scmp.ne.s32.totalorder %s267, %s268
      %p277 = scmp.eq.s32.totalorder %s26, 0
      %p278 = por %p276, %p277
      %p279 = scmp.ne.s32.totalorder %s267, %s268
      %p280 = scmp.eq.s32.totalorder %s27, 1
      %p281 = por %p279, %p280
      %p283 = scmp.ne.s32.totalorder %s268, %s282
      %p284 = scmp.eq.s32.totalorder %s27, 0
      %p285 = por %p283, %p284
      %s286 = ssub.s32 %s21, %s28
      %p287 = scmp.eq.s32.totalorder %s286, 0
      %s289 = sadd.s32 %s288, 1
      %s290 = scalar_select %p287, %s288, %s289
      %p293 = pneg %p287
      %p294 = scmp.eq.s32.totalorder %s21, 1
      %p295 = por %p293, %p294
      %p296 = scmp.ne.s32.totalorder %s288, %s291
      %p297 = scmp.eq.s32.totalorder %s21, 0
      %p298 = por %p296, %p297
      %p299 = scmp.ne.s32.totalorder %s288, %s291
      %p300 = scmp.eq.s32.totalorder %s26, 1
      %p301 = por %p299, %p300
      %p302 = scmp.ne.s32.totalorder %s291, %s292
      %p303 = scmp.eq.s32.totalorder %s26, 0
      %p304 = por %p302, %p303
      %p305 = scmp.ne.s32.totalorder %s291, %s292
      %p306 = scmp.eq.s32.totalorder %s27, 1
      %p307 = por %p305, %p306
      %p309 = scmp.ne.s32.totalorder %s292, %s308
      %p310 = scmp.eq.s32.totalorder %s27, 0
      %p311 = por %p309, %p310
      %p312 = scmp.le.s32.totalorder 1, %s21
      %p313 = scmp.lt.s32.totalorder %s21, 3
      %p314 = pnand %p312, %p313
      %p315 = pneg %p314
      // Predicated region
      $region9: #{tpu_custom_call.1} parent=5 // pred_check
        _
      $region10: #{tpu_custom_call.1} parent=5 // pred_check_branch
        %317 = sbr.rel (%p314) target = $region12
      $region11: #{tpu_custom_call.1} parent=5 // pred_region
        %s318 = ssub.s32 %s21, 1
        // Predicated region
        $region13: #{tpu_custom_call.1} parent=11 // pred_check
          %p319 = pneg %p68
        $region14: #{tpu_custom_call.1} parent=11 // pred_check_branch
          %321 = sbr.rel (%p319) target = $region16
        $region15: #{tpu_custom_call.1} parent=11 // pred_region
          _
        $region16: #{tpu_custom_call.1} parent=11 // pred_fallthru
          _
        // Predicated region
        $region17: #{tpu_custom_call.1} parent=11 // pred_check
          %p322 = pneg %p89
        $region18: #{tpu_custom_call.1} parent=11 // pred_check_branch
          %324 = sbr.rel (%p322) target = $region20
        $region19: #{tpu_custom_call.1} parent=11 // pred_region
          _
        $region20: #{tpu_custom_call.1} parent=11 // pred_fallthru
          _
        // Predicated region
        $region21: #{tpu_custom_call.1} parent=11 // pred_check
          %p325 = pneg %p110
        $region22: #{tpu_custom_call.1} parent=11 // pred_check_branch
          %327 = sbr.rel (%p325) target = $region24
        $region23: #{tpu_custom_call.1} parent=11 // pred_region
          _
        $region24: #{tpu_custom_call.1} parent=11 // pred_fallthru
          _
        // Predicated region
        $region25: #{tpu_custom_call.1} parent=11 // pred_check
          %p328 = pneg %p131
        $region26: #{tpu_custom_call.1} parent=11 // pred_check_branch
          %330 = sbr.rel (%p328) target = $region28
        $region27: #{tpu_custom_call.1} parent=11 // pred_region
          _
        $region28: #{tpu_custom_call.1} parent=11 // pred_fallthru
          _
        // Predicated region
        $region29: #{tpu_custom_call.1} parent=11 // pred_check
          %p331 = pneg %p152
        $region30: #{tpu_custom_call.1} parent=11 // pred_check_branch
          %333 = sbr.rel (%p331) target = $region32
        $region31: #{tpu_custom_call.1} parent=11 // pred_region
          _
        $region32: #{tpu_custom_call.1} parent=11 // pred_fallthru
          _
        // Predicated region
        $region33: #{tpu_custom_call.1} parent=11 // pred_check
          %p334 = pneg %p173
        $region34: #{tpu_custom_call.1} parent=11 // pred_check_branch
          %336 = sbr.rel (%p334) target = $region36
        $region35: #{tpu_custom_call.1} parent=11 // pred_region
          _
        $region36: #{tpu_custom_call.1} parent=11 // pred_fallthru
          _
        // Predicated region
        $region37: #{tpu_custom_call.1} parent=11 // pred_check
          %p337 = pneg %p194
        $region38: #{tpu_custom_call.1} parent=11 // pred_check_branch
          %339 = sbr.rel (%p337) target = $region40
        $region39: #{tpu_custom_call.1} parent=11 // pred_region
          _
        $region40: #{tpu_custom_call.1} parent=11 // pred_fallthru
          _
        // Predicated region
        $region41: #{tpu_custom_call.1} parent=11 // pred_check
          %p340 = pneg %p215
        $region42: #{tpu_custom_call.1} parent=11 // pred_check_branch
          %342 = sbr.rel (%p340) target = $region44
        $region43: #{tpu_custom_call.1} parent=11 // pred_region
          _
        $region44: #{tpu_custom_call.1} parent=11 // pred_fallthru
          _
        // Predicated region
        $region45: #{tpu_custom_call.1} parent=11 // pred_check
          %p343 = pneg %p236
        $region46: #{tpu_custom_call.1} parent=11 // pred_check_branch
          %345 = sbr.rel (%p343) target = $region48
        $region47: #{tpu_custom_call.1} parent=11 // pred_region
          _
        $region48: #{tpu_custom_call.1} parent=11 // pred_fallthru
          _
        // Predicated region
        $region49: #{tpu_custom_call.1} parent=11 // pred_check
          %p346 = pneg %p257
        $region50: #{tpu_custom_call.1} parent=11 // pred_check_branch
          %348 = sbr.rel (%p346) target = $region52
        $region51: #{tpu_custom_call.1} parent=11 // pred_region
          _
        $region52: #{tpu_custom_call.1} parent=11 // pred_fallthru
          _
        // Predicated region
        $region53: #{tpu_custom_call.1} parent=11 // pred_check
          %p349 = pneg %p278
        $region54: #{tpu_custom_call.1} parent=11 // pred_check_branch
          %351 = sbr.rel (%p349) target = $region56
        $region55: #{tpu_custom_call.1} parent=11 // pred_region
          _
        $region56: #{tpu_custom_call.1} parent=11 // pred_fallthru
          _
      $region12: #{tpu_custom_call.1} parent=5 // pred_fallthru
        _
      %p352 = scmp.lt.s32.totalorder %s21, 2
      // Predicated region
      $region57: #{tpu_custom_call.1} parent=5 // pred_check
        %p353 = pneg %p352
      $region58: #{tpu_custom_call.1} parent=5 // pred_check_branch
        %355 = sbr.rel (%p353) target = $region60
      $region59: #{tpu_custom_call.1} parent=5 // pred_region
        // Predicated region
        $region61: #{tpu_custom_call.1} parent=59 // pred_check
          %p356 = pneg %p41
        $region62: #{tpu_custom_call.1} parent=59 // pred_check_branch
          %358 = sbr.rel (%p356) target = $region64
        $region63: #{tpu_custom_call.1} parent=59 // pred_region
          %p359 = scmp.lt.s32.totalorder %s21, 1
          %s360 = scalar_select %p359, %s21, 1
          %s361 = smul.addr %s360, 8
          %s362 = scalar_lea.vmem %s0, %s361
        $region64: #{tpu_custom_call.1} parent=59 // pred_fallthru
          _
      $region60: #{tpu_custom_call.1} parent=5 // pred_fallthru
        _
      %p363 = scmp.le.s32.totalorder 1, %s21
      %p364 = scmp.lt.s32.totalorder %s21, 3
      %p365 = pnand %p363, %p364
      %p366 = pneg %p365
      // Predicated region
      $region65: #{tpu_custom_call.1} parent=5 // pred_check
        _
      $region66: #{tpu_custom_call.1} parent=5 // pred_check_branch
        %368 = sbr.rel (%p365) target = $region68
      $region67: #{tpu_custom_call.1} parent=5 // pred_region
        %s369 = ssub.s32 %s21, 1
        %p370 = scmp.lt.s32.totalorder %s26, 1
        %s371 = scalar_select %p370, %s26, 1
        %s372 = smul.addr %s371, 8
        %s373 = scalar_lea.vmem %s0, %s372
        %p374 = pneg %p47
        %p375 = pneg %p44
        %p376 = pneg %p68
        %p377 = pneg %p65
        %p378 = pneg %p89
        %p379 = pneg %p86
        %p380 = pneg %p110
        %p381 = pneg %p107
        %p382 = pneg %p131
        %p383 = pneg %p128
        %p384 = pneg %p152
        %p385 = pneg %p149
        %p386 = pneg %p173
        %p387 = pneg %p170
        %p388 = pneg %p194
        %p389 = pneg %p191
        %p390 = pneg %p215
        %p391 = pneg %p212
        %p392 = pneg %p236
        %p393 = pneg %p233
        %p394 = pneg %p257
        %p395 = pneg %p254
        %p396 = pneg %p278
        %p397 = pneg %p275
        %p398 = pneg %p304
        %p399 = pneg %p301
        %s400 = sand.u32 %s291, 1
        %s401 = scalar_lea.sflag [#allocation3], %s400
        %s402 = sand.u32 %s291, 1
        %s403 = smul.addr %s402, 8
        %s404 = scalar_lea.vmem [#allocation2], %s403
        %p405 = scmp.lt.s32.totalorder %s26, 1
        %s406 = scalar_select %p405, %s26, 1
        %s407 = smul.addr %s406, 8
        %s408 = scalar_lea.vmem %s0, %s407
        %v410 = vld [vmem:[%s408] sm:$0xff]
        %vm411 = vcmask 261120
        %v412 = vsel %vm411, %v410, 0.0
        %413 = vadd.xlane.f32.xlu0 %v412
        %v414 = vpop.xlane.xlu0 %413
        %v415 = vrcp.pop 32.0
        %v416 = vmul.f32 %v414, %v415
        %v417 = vsub.f32 %v410, %v416
        %v418 = vmul.f32 %v417, %v417
        %v419 = vsel %vm411, %v418, 0.0
        %420 = vadd.xlane.f32.xlu0 %v419
        %v421 = vpop.xlane.xlu0 %420
        %v422 = vmul.f32 %v421, %v415
        %v423 = vadd.f32 %v422, 1e-05
        %v424 = vrsqrt.pop %v423
        %v425 = vmul.f32 %v417, %v424
        %v426 = vld [vmem:[%s1] sm:$0x1]
        %v428 = vlaneseq
        %v429 = vshrl.u32 %v428, 7
        %v430 = vsub.s32 0, %v429
        %v431 = vrot.slane %v426, %v430
        %v433 = vmul.f32 %v425, %v431
        %v434 = vld [vmem:[%s2] sm:$0x1]
        %v436 = vlaneseq
        %v437 = vshrl.u32 %v436, 7
        %v438 = vsub.s32 0, %v437
        %v439 = vrot.slane %v434, %v438
        %v441 = vadd.f32 %v433, %v439
        %v442 = vpack.c.bf16 %v441, %v441
        %v443 = vld [vmem:[%s3] sm:$0xf]
        %v444 = vld [vmem:[%s3 + $0x4] sm:$0xf]
        %v445 = vld [vmem:[%s3 + $0x8] sm:$0xf]
        %v446 = vld [vmem:[%s3 + $0xc] sm:$0xf]
        %v451 = vunpack.c.l.b16 %v443
        %v452 = vunpack.c.l.b16 %v444
        %v453 = vunpack.c.l.b16 %v445
        %v454 = vunpack.c.l.b16 %v446
        %v455 = vpack.c.b16 %v452, %v451
        %v456 = vpack.c.b16 %v454, %v453
        %v460 = vsel %vm411, %v442, 0
        %462 = vmatprep.subr.bf16.mxu0 0
        %463 = vmatpush1.bf16.msra.mxu0 %v455
        %464 = vmatprep.subr.bf16.mxu0 0
        %465 = vmatpush1.bf16.msra.mxu0 %v456
        %466 = vmatprep.subr.bf16.mxu0 0
        %467 = vmatpush1.bf16.msra.mxu0 0
        %468 = vmatprep.subr.bf16.mxu0 0
        %469 = vmatpush1.bf16.msra.mxu0 0
        %470 = vmatprep.subr.bf16.mxu0 0
        %471 = vmatpush1.bf16.msra.mxu0 0
        %472 = vmatprep.subr.bf16.mxu0 0
        %473 = vmatpush1.bf16.msra.mxu0 0
        %474 = vmatprep.subr.bf16.mxu0 0
        %475 = vmatpush1.bf16.msra.mxu0 0
        %476 = vmatprep.subr.bf16.mxu0 0
        %477 = vmatpush1.bf16.msra.mxu0 0
        %478 = vmatprep.subr.bf16.mxu0 0
        %479 = vmatpush1.bf16.msra.mxu0 0
        %480 = vmatprep.subr.bf16.mxu0 0
        %481 = vmatpush1.bf16.msra.mxu0 0
        %482 = vmatprep.subr.bf16.mxu0 0
        %483 = vmatpush1.bf16.msra.mxu0 0
        %484 = vmatprep.subr.bf16.mxu0 0
        %485 = vmatpush1.bf16.msra.mxu0 0
        %486 = vmatprep.subr.bf16.mxu0 0
        %487 = vmatpush1.bf16.msra.mxu0 0
        %488 = vmatprep.subr.bf16.mxu0 0
        %489 = vmatpush1.bf16.msra.mxu0 0
        %490 = vmatprep.subr.bf16.mxu0 0
        %491 = vmatpush1.bf16.msra.mxu0 0
        %492 = vmatprep.subr.bf16.mxu0 0
        %493 = vmatpush1.bf16.msra.mxu0 0
        %494 = vmatprep.mubr.bf16.mxu0 0
        %495 = vmatmul.mubr.bf16.gmra.mrb[0].mxu0 %v460
        %v496 = vpop.f32.mrb[0].mxu0
        %v497 = vadd.f32 0.0, %v496
        %v498 = vpop.f32.mrb[0].mxu0
        %v499 = vpop.f32.mrb[0].mxu0
        %v500 = vpop.f32.mrb[0].mxu0
        %501 = vdwg.mxu0
        %v502 = vpack.c.bf16 %v497, %v497
        %504 = vrot.lane.b32.xlu0 %v502, 120
        %v505 = vpop.permute.xlu0 %504
        %507 = vrot.lane.b32.xlu0 %v502, 112
        %v508 = vpop.permute.xlu0 %507
        %510 = vrot.lane.b32.xlu0 %v502, 104
        %v511 = vpop.permute.xlu0 %510
        %513 = vrot.lane.b32.xlu0 %v502, 96
        %v514 = vpop.permute.xlu0 %513
        %516 = vrot.lane.b32.xlu0 %v502, 88
        %v517 = vpop.permute.xlu0 %516
        %519 = vrot.lane.b32.xlu0 %v502, 80
        %v520 = vpop.permute.xlu0 %519
        %522 = vrot.lane.b32.xlu0 %v502, 72
        %v523 = vpop.permute.xlu0 %522
        %525 = vrot.lane.b32.xlu0 %v502, 64
        %v526 = vpop.permute.xlu0 %525
        %527 = vrot.lane.b32.xlu0 %v502, 56
        %v528 = vpop.permute.xlu0 %527
        %529 = vrot.lane.b32.xlu0 %v502, 48
        %v530 = vpop.permute.xlu0 %529
        %531 = vrot.lane.b32.xlu0 %v502, 40
        %v532 = vpop.permute.xlu0 %531
        %v533 = vcombine.low %v502, %v514
        %v535 = vunpack.c.l.s4 1983009808
        %v536 = vunpack.c.0.s8 %v535
        %v537 = vlaneseq
        %v538 = vshrl.u32 %v537, 7
        %v539 = vsub.s32 %v536, %v538
        %v540 = vrot.slane %v533, %v539
        %v541 = vcombine.low %v508, %v520
        %v543 = vunpack.c.l.s4 1983009808
        %v544 = vunpack.c.0.s8 %v543
        %v545 = vlaneseq
        %v546 = vshrl.u32 %v545, 7
        %v547 = vsub.s32 %v544, %v546
        %v548 = vrot.slane %v541, %v547
        %v551 = vunpack.c.l.s4 1983009808
        %v552 = vunpack.c.0.s8 %v551
        %v553 = vlaneseq
        %v554 = vshrl.u32 %v553, 7
        %v555 = vsub.s32 %v552, %v554
        %v556 = vrot.slane %v526, %v555
        %v559 = vunpack.c.l.s4 1983009808
        %v560 = vunpack.c.0.s8 %v559
        %v561 = vlaneseq
        %v562 = vshrl.u32 %v561, 7
        %v563 = vsub.s32 %v560, %v562
        %v564 = vrot.slane %v530, %v563
        %v565 = vcombine.low %v540, %v548
        %v566 = vcombine.high %v540, %v548
        %v568 = vunpack.c.l.s4 1934713408
        %v569 = vunpack.c.0.s8 %v568
        %v570 = vlaneseq
        %v571 = vshrl.u32 %v570, 7
        %v572 = vsub.s32 %v569, %v571
        %v573 = vrot.slane %v565, %v572
        %v575 = vunpack.c.l.s4 1934713408
        %v576 = vunpack.c.0.s8 %v575
        %v577 = vlaneseq
        %v578 = vshrl.u32 %v577, 7
        %v579 = vsub.s32 %v576, %v578
        %v580 = vrot.slane %v566, %v579
        %v581 = vcombine.low %v556, %v564
        %v582 = vcombine.high %v556, %v564
        %v584 = vunpack.c.l.s4 1934713408
        %v585 = vunpack.c.0.s8 %v584
        %v586 = vlaneseq
        %v587 = vshrl.u32 %v586, 7
        %v588 = vsub.s32 %v585, %v587
        %v589 = vrot.slane %v581, %v588
        %v591 = vunpack.c.l.s4 1934713408
        %v592 = vunpack.c.0.s8 %v591
        %v593 = vlaneseq
        %v594 = vshrl.u32 %v593, 7
        %v595 = vsub.s32 %v592, %v594
        %v596 = vrot.slane %v582, %v595
        %v597 = vcombine.low %v573, %v589
        %v598 = vcombine.high %v573, %v589
        %v599 = vcombine.low %v580, %v596
        %v600 = vcombine.high %v580, %v596
        %v601 = vcombine.low %v505, %v517
        %v603 = vunpack.c.l.s4 1983009808
        %v604 = vunpack.c.0.s8 %v603
        %v605 = vlaneseq
        %v606 = vshrl.u32 %v605, 7
        %v607 = vsub.s32 %v604, %v606
        %v608 = vrot.slane %v601, %v607
        %v609 = vcombine.low %v511, %v523
        %v611 = vunpack.c.l.s4 1983009808
        %v612 = vunpack.c.0.s8 %v611
        %v613 = vlaneseq
        %v614 = vshrl.u32 %v613, 7
        %v615 = vsub.s32 %v612, %v614
        %v616 = vrot.slane %v609, %v615
        %v619 = vunpack.c.l.s4 1983009808
        %v620 = vunpack.c.0.s8 %v619
        %v621 = vlaneseq
        %v622 = vshrl.u32 %v621, 7
        %v623 = vsub.s32 %v620, %v622
        %v624 = vrot.slane %v528, %v623
        %v627 = vunpack.c.l.s4 1983009808
        %v628 = vunpack.c.0.s8 %v627
        %v629 = vlaneseq
        %v630 = vshrl.u32 %v629, 7
        %v631 = vsub.s32 %v628, %v630
        %v632 = vrot.slane %v532, %v631
        %v633 = vcombine.low %v608, %v616
        %v634 = vcombine.high %v608, %v616
        %v636 = vunpack.c.l.s4 1934713408
        %v637 = vunpack.c.0.s8 %v636
        %v638 = vlaneseq
        %v639 = vshrl.u32 %v638, 7
        %v640 = vsub.s32 %v637, %v639
        %v641 = vrot.slane %v633, %v640
        %v643 = vunpack.c.l.s4 1934713408
        %v644 = vunpack.c.0.s8 %v643
        %v645 = vlaneseq
        %v646 = vshrl.u32 %v645, 7
        %v647 = vsub.s32 %v644, %v646
        %v648 = vrot.slane %v634, %v647
        %v649 = vcombine.low %v624, %v632
        %v650 = vcombine.high %v624, %v632
        %v652 = vunpack.c.l.s4 1934713408
        %v653 = vunpack.c.0.s8 %v652
        %v654 = vlaneseq
        %v655 = vshrl.u32 %v654, 7
        %v656 = vsub.s32 %v653, %v655
        %v657 = vrot.slane %v649, %v656
        %v659 = vunpack.c.l.s4 1934713408
        %v660 = vunpack.c.0.s8 %v659
        %v661 = vlaneseq
        %v662 = vshrl.u32 %v661, 7
        %v663 = vsub.s32 %v660, %v662
        %v664 = vrot.slane %v650, %v663
        %v665 = vcombine.low %v641, %v657
        %v666 = vcombine.high %v641, %v657
        %v667 = vcombine.low %v648, %v664
        %v668 = vcombine.high %v648, %v664
        %v671 = vpack.i.b16 %v665, %v597
        %v673 = vshrl.u32 %v597, 16
        %v674 = vshrl.u32 %v665, 16
        %v675 = vpack.i.b16 %v674, %v673
        %v679 = vpack.i.b16 %v666, %v598
        %v681 = vshrl.u32 %v598, 16
        %v682 = vshrl.u32 %v666, 16
        %v683 = vpack.i.b16 %v682, %v681
        %v687 = vpack.i.b16 %v667, %v599
        %v689 = vshrl.u32 %v599, 16
        %v690 = vshrl.u32 %v667, 16
        %v691 = vpack.i.b16 %v690, %v689
        %v695 = vpack.i.b16 %v668, %v600
        %v697 = vshrl.u32 %v600, 16
        %v698 = vshrl.u32 %v668, 16
        %v699 = vpack.i.b16 %v698, %v697
        %v701 = vcombine.low %v671, %v687
        %v702 = vcombine.high %v671, %v687
        %v704 = vunpack.c.l.s4 1983009808
        %v705 = vunpack.c.0.s8 %v704
        %v706 = vlaneseq
        %v707 = vshrl.u32 %v706, 7
        %v708 = vsub.s32 %v705, %v707
        %v709 = vrot.slane %v701, %v708
        %v711 = vunpack.c.l.s4 1983009808
        %v712 = vunpack.c.0.s8 %v711
        %v713 = vlaneseq
        %v714 = vshrl.u32 %v713, 7
        %v715 = vsub.s32 %v712, %v714
        %v716 = vrot.slane %v702, %v715
        %v717 = vcombine.low %v679, %v695
        %v718 = vcombine.high %v679, %v695
        %v720 = vunpack.c.l.s4 1983009808
        %v721 = vunpack.c.0.s8 %v720
        %v722 = vlaneseq
        %v723 = vshrl.u32 %v722, 7
        %v724 = vsub.s32 %v721, %v723
        %v725 = vrot.slane %v717, %v724
        %v727 = vunpack.c.l.s4 1983009808
        %v728 = vunpack.c.0.s8 %v727
        %v729 = vlaneseq
        %v730 = vshrl.u32 %v729, 7
        %v731 = vsub.s32 %v728, %v730
        %v732 = vrot.slane %v718, %v731
        %v733 = vcombine.low %v709, %v725
        %v734 = vcombine.high %v709, %v725
        %v736 = vunpack.c.l.s4 1934713408
        %v737 = vunpack.c.0.s8 %v736
        %v738 = vlaneseq
        %v739 = vshrl.u32 %v738, 7
        %v740 = vsub.s32 %v737, %v739
        %v741 = vrot.slane %v733, %v740
        %v743 = vunpack.c.l.s4 1934713408
        %v744 = vunpack.c.0.s8 %v743
        %v745 = vlaneseq
        %v746 = vshrl.u32 %v745, 7
        %v747 = vsub.s32 %v744, %v746
        %v748 = vrot.slane %v734, %v747
        %v749 = vcombine.low %v716, %v732
        %v751 = vunpack.c.l.s4 1934713408
        %v752 = vunpack.c.0.s8 %v751
        %v753 = vlaneseq
        %v754 = vshrl.u32 %v753, 7
        %v755 = vsub.s32 %v752, %v754
        %v756 = vrot.slane %v749, %v755
        %v757 = vcombine.high %v741, 0
        %v758 = vcombine.high %v748, 0
        %v759 = vcombine.high %v756, 0
        %v760 = vcombine.low %v675, %v691
        %v761 = vcombine.high %v675, %v691
        %v763 = vunpack.c.l.s4 1983009808
        %v764 = vunpack.c.0.s8 %v763
        %v765 = vlaneseq
        %v766 = vshrl.u32 %v765, 7
        %v767 = vsub.s32 %v764, %v766
        %v768 = vrot.slane %v760, %v767
        %v770 = vunpack.c.l.s4 1983009808
        %v771 = vunpack.c.0.s8 %v770
        %v772 = vlaneseq
        %v773 = vshrl.u32 %v772, 7
        %v774 = vsub.s32 %v771, %v773
        %v775 = vrot.slane %v761, %v774
        %v776 = vcombine.low %v683, %v699
        %v777 = vcombine.high %v683, %v699
        %v779 = vunpack.c.l.s4 1983009808
        %v780 = vunpack.c.0.s8 %v779
        %v781 = vlaneseq
        %v782 = vshrl.u32 %v781, 7
        %v783 = vsub.s32 %v780, %v782
        %v784 = vrot.slane %v776, %v783
        %v786 = vunpack.c.l.s4 1983009808
        %v787 = vunpack.c.0.s8 %v786
        %v788 = vlaneseq
        %v789 = vshrl.u32 %v788, 7
        %v790 = vsub.s32 %v787, %v789
        %v791 = vrot.slane %v777, %v790
        %v792 = vcombine.low %v768, %v784
        %v793 = vcombine.high %v768, %v784
        %v795 = vunpack.c.l.s4 1934713408
        %v796 = vunpack.c.0.s8 %v795
        %v797 = vlaneseq
        %v798 = vshrl.u32 %v797, 7
        %v799 = vsub.s32 %v796, %v798
        %v800 = vrot.slane %v792, %v799
        %v802 = vunpack.c.l.s4 1934713408
        %v803 = vunpack.c.0.s8 %v802
        %v804 = vlaneseq
        %v805 = vshrl.u32 %v804, 7
        %v806 = vsub.s32 %v803, %v805
        %v807 = vrot.slane %v793, %v806
        %v808 = vcombine.low %v775, %v791
        %v810 = vunpack.c.l.s4 1934713408
        %v811 = vunpack.c.0.s8 %v810
        %v812 = vlaneseq
        %v813 = vshrl.u32 %v812, 7
        %v814 = vsub.s32 %v811, %v813
        %v815 = vrot.slane %v808, %v814
        %v816 = vcombine.high %v800, 0
        %v817 = vcombine.high %v807, 0
        %v818 = vcombine.high %v815, 0
        %v821 = vpack.i.b16 %v800, %v741
        %v822 = vshrl.u32 %v741, 16
        %v823 = vshrl.u32 %v800, 16
        %v824 = vpack.i.b16 %v823, %v822
        %v827 = vpack.i.b16 %v816, %v757
        %v828 = vshrl.u32 %v757, 16
        %v829 = vshrl.u32 %v816, 16
        %v830 = vpack.i.b16 %v829, %v828
        %v833 = vpack.i.b16 %v807, %v748
        %v834 = vshrl.u32 %v748, 16
        %v835 = vshrl.u32 %v807, 16
        %v836 = vpack.i.b16 %v835, %v834
        %v839 = vpack.i.b16 %v817, %v758
        %v840 = vshrl.u32 %v758, 16
        %v841 = vshrl.u32 %v817, 16
        %v842 = vpack.i.b16 %v841, %v840
        %v845 = vpack.i.b16 %v815, %v756
        %v846 = vshrl.u32 %v756, 16
        %v847 = vshrl.u32 %v815, 16
        %v848 = vpack.i.b16 %v847, %v846
        %v851 = vpack.i.b16 %v818, %v759
        %v852 = vshrl.u32 %v759, 16
        %v853 = vshrl.u32 %v818, 16
        %v854 = vpack.i.b16 %v853, %v852
        %vm855 = vcmask 64512
        %v857 = vsel %vm855, %v821, 0
        %v860 = vsel %vm855, %v833, 0
        %862 = vmatprep.subr.bf16.mxu0 0
        %863 = vmatpush1.bf16.xpose.msra.mxu0 %v860
        %864 = vmatprep.subr.bf16.mxu0 0
        %865 = vmatpush1.bf16.xpose.msra.mxu0 0
        %866 = vmatprep.subr.bf16.mxu0 0
        %867 = vmatpush1.bf16.xpose.msra.mxu0 0
        %868 = vmatprep.subr.bf16.mxu0 0
        %869 = vmatpush1.bf16.xpose.msra.mxu0 0
        %870 = vmatprep.subr.bf16.mxu0 0
        %871 = vmatpush1.bf16.xpose.msra.mxu0 0
        %872 = vmatprep.subr.bf16.mxu0 0
        %873 = vmatpush1.bf16.xpose.msra.mxu0 0
        %874 = vmatprep.subr.bf16.mxu0 0
        %875 = vmatpush1.bf16.xpose.msra.mxu0 0
        %876 = vmatprep.subr.bf16.mxu0 0
        %877 = vmatpush1.bf16.xpose.msra.mxu0 0
        %878 = vmatprep.subr.bf16.mxu0 0
        %879 = vmatpush1.bf16.xpose.msra.mxu0 0
        %880 = vmatprep.subr.bf16.mxu0 0
        %881 = vmatpush1.bf16.xpose.msra.mxu0 0
        %882 = vmatprep.subr.bf16.mxu0 0
        %883 = vmatpush1.bf16.xpose.msra.mxu0 0
        %884 = vmatprep.subr.bf16.mxu0 0
        %885 = vmatpush1.bf16.xpose.msra.mxu0 0
        %886 = vmatprep.subr.bf16.mxu0 0
        %887 = vmatpush1.bf16.xpose.msra.mxu0 0
        %888 = vmatprep.subr.bf16.mxu0 0
        %889 = vmatpush1.bf16.xpose.msra.mxu0 0
        %890 = vmatprep.subr.bf16.mxu0 0
        %891 = vmatpush1.bf16.xpose.msra.mxu0 0
        %892 = vmatprep.subr.bf16.mxu0 0
        %893 = vmatpush1.bf16.xpose.msra.mxu0 0
        %894 = vmatprep.mubr.bf16.mxu0 0
        %895 = vmatmul.mubr.bf16.gmra.mrb[0].mxu0 %v857
        %v896 = vpop.f32.mrb[0].mxu0
        %v897 = vadd.f32 0.0, %v896
        %v898 = vpop.f32.mrb[0].mxu0
        %v899 = vpop.f32.mrb[0].mxu0
        %v900 = vpop.f32.mrb[0].mxu0
        %901 = vdwg.mxu0
        %v903 = vsel %vm855, %v824, 0
        %v906 = vsel %vm855, %v836, 0
        %908 = vmatprep.subr.bf16.mxu0 0
        %909 = vmatpush1.bf16.xpose.msra.mxu0 %v906
        %910 = vmatprep.subr.bf16.mxu0 0
        %911 = vmatpush1.bf16.xpose.msra.mxu0 0
        %912 = vmatprep.subr.bf16.mxu0 0
        %913 = vmatpush1.bf16.xpose.msra.mxu0 0
        %914 = vmatprep.subr.bf16.mxu0 0
        %915 = vmatpush1.bf16.xpose.msra.mxu0 0
        %916 = vmatprep.subr.bf16.mxu0 0
        %917 = vmatpush1.bf16.xpose.msra.mxu0 0
        %918 = vmatprep.subr.bf16.mxu0 0
        %919 = vmatpush1.bf16.xpose.msra.mxu0 0
        %920 = vmatprep.subr.bf16.mxu0 0
        %921 = vmatpush1.bf16.xpose.msra.mxu0 0
        %922 = vmatprep.subr.bf16.mxu0 0
        %923 = vmatpush1.bf16.xpose.msra.mxu0 0
        %924 = vmatprep.subr.bf16.mxu0 0
        %925 = vmatpush1.bf16.xpose.msra.mxu0 0
        %926 = vmatprep.subr.bf16.mxu0 0
        %927 = vmatpush1.bf16.xpose.msra.mxu0 0
        %928 = vmatprep.subr.bf16.mxu0 0
        %929 = vmatpush1.bf16.xpose.msra.mxu0 0
        %930 = vmatprep.subr.bf16.mxu0 0
        %931 = vmatpush1.bf16.xpose.msra.mxu0 0
        %932 = vmatprep.subr.bf16.mxu0 0
        %933 = vmatpush1.bf16.xpose.msra.mxu0 0
        %934 = vmatprep.subr.bf16.mxu0 0
        %935 = vmatpush1.bf16.xpose.msra.mxu0 0
        %936 = vmatprep.subr.bf16.mxu0 0
        %937 = vmatpush1.bf16.xpose.msra.mxu0 0
        %938 = vmatprep.subr.bf16.mxu0 0
        %939 = vmatpush1.bf16.xpose.msra.mxu0 0
        %940 = vmatprep.mubr.bf16.mxu0 0
        %941 = vmatmul.mubr.bf16.gmra.mrb[0].mxu0 %v903
        %v942 = vpop.f32.mrb[0].mxu0
        %v943 = vadd.f32 0.0, %v942
        %v944 = vpop.f32.mrb[0].mxu0
        %v945 = vpop.f32.mrb[0].mxu0
        %v946 = vpop.f32.mrb[0].mxu0
        %947 = vdwg.mxu0
        %v949 = vsel %vm855, %v827, 0
        %v952 = vsel %vm855, %v839, 0
        %954 = vmatprep.subr.bf16.mxu0 0
        %955 = vmatpush1.bf16.xpose.msra.mxu0 %v952
        %956 = vmatprep.subr.bf16.mxu0 0
        %957 = vmatpush1.bf16.xpose.msra.mxu0 0
        %958 = vmatprep.subr.bf16.mxu0 0
        %959 = vmatpush1.bf16.xpose.msra.mxu0 0
        %960 = vmatprep.subr.bf16.mxu0 0
        %961 = vmatpush1.bf16.xpose.msra.mxu0 0
        %962 = vmatprep.subr.bf16.mxu0 0
        %963 = vmatpush1.bf16.xpose.msra.mxu0 0
        %964 = vmatprep.subr.bf16.mxu0 0
        %965 = vmatpush1.bf16.xpose.msra.mxu0 0
        %966 = vmatprep.subr.bf16.mxu0 0
        %967 = vmatpush1.bf16.xpose.msra.mxu0 0
        %968 = vmatprep.subr.bf16.mxu0 0
        %969 = vmatpush1.bf16.xpose.msra.mxu0 0
        %970 = vmatprep.subr.bf16.mxu0 0
        %971 = vmatpush1.bf16.xpose.msra.mxu0 0
        %972 = vmatprep.subr.bf16.mxu0 0
        %973 = vmatpush1.bf16.xpose.msra.mxu0 0
        %974 = vmatprep.subr.bf16.mxu0 0
        %975 = vmatpush1.bf16.xpose.msra.mxu0 0
        %976 = vmatprep.subr.bf16.mxu0 0
        %977 = vmatpush1.bf16.xpose.msra.mxu0 0
        %978 = vmatprep.subr.bf16.mxu0 0
        %979 = vmatpush1.bf16.xpose.msra.mxu0 0
        %980 = vmatprep.subr.bf16.mxu0 0
        %981 = vmatpush1.bf16.xpose.msra.mxu0 0
        %982 = vmatprep.subr.bf16.mxu0 0
        %983 = vmatpush1.bf16.xpose.msra.mxu0 0
        %984 = vmatprep.subr.bf16.mxu0 0
        %985 = vmatpush1.bf16.xpose.msra.mxu0 0
        %986 = vmatprep.mubr.bf16.mxu0 0
        %987 = vmatmul.mubr.bf16.gmra.mrb[0].mxu0 %v949
        %v988 = vpop.f32.mrb[0].mxu0
        %v989 = vadd.f32 0.0, %v988
        %v990 = vpop.f32.mrb[0].mxu0
        %v991 = vpop.f32.mrb[0].mxu0
        %v992 = vpop.f32.mrb[0].mxu0
        %993 = vdwg.mxu0
        %v995 = vsel %vm855, %v830, 0
        %v998 = vsel %vm855, %v842, 0
        %1000 = vmatprep.subr.bf16.mxu0 0
        %1001 = vmatpush1.bf16.xpose.msra.mxu0 %v998
        %1002 = vmatprep.subr.bf16.mxu0 0
        %1003 = vmatpush1.bf16.xpose.msra.mxu0 0
        %1004 = vmatprep.subr.bf16.mxu0 0
        %1005 = vmatpush1.bf16.xpose.msra.mxu0 0
        %1006 = vmatprep.subr.bf16.mxu0 0
        %1007 = vmatpush1.bf16.xpose.msra.mxu0 0
        %1008 = vmatprep.subr.bf16.mxu0 0
        %1009 = vmatpush1.bf16.xpose.msra.mxu0 0
        %1010 = vmatprep.subr.bf16.mxu0 0
        %1011 = vmatpush1.bf16.xpose.msra.mxu0 0
        %1012 = vmatprep.subr.bf16.mxu0 0
        %1013 = vmatpush1.bf16.xpose.msra.mxu0 0
        %1014 = vmatprep.subr.bf16.mxu0 0
        %1015 = vmatpush1.bf16.xpose.msra.mxu0 0
        %1016 = vmatprep.subr.bf16.mxu0 0
        %1017 = vmatpush1.bf16.xpose.msra.mxu0 0
        %1018 = vmatprep.subr.bf16.mxu0 0
        %1019 = vmatpush1.bf16.xpose.msra.mxu0 0
        %1020 = vmatprep.subr.bf16.mxu0 0
        %1021 = vmatpush1.bf16.xpose.msra.mxu0 0
        %1022 = vmatprep.subr.bf16.mxu0 0
        %1023 = vmatpush1.bf16.xpose.msra.mxu0 0
        %1024 = vmatprep.subr.bf16.mxu0 0
        %1025 = vmatpush1.bf16.xpose.msra.mxu0 0
        %1026 = vmatprep.subr.bf16.mxu0 0
        %1027 = vmatpush1.bf16.xpose.msra.mxu0 0
        %1028 = vmatprep.subr.bf16.mxu0 0
        %1029 = vmatpush1.bf16.xpose.msra.mxu0 0
        %1030 = vmatprep.subr.bf16.mxu0 0
        %1031 = vmatpush1.bf16.xpose.msra.mxu0 0
        %1032 = vmatprep.mubr.bf16.mxu0 0
        %1033 = vmatmul.mubr.bf16.gmra.mrb[0].mxu0 %v995
        %v1034 = vpop.f32.mrb[0].mxu0
        %v1035 = vadd.f32 0.0, %v1034
        %v1036 = vpop.f32.mrb[0].mxu0
        %v1037 = vpop.f32.mrb[0].mxu0
        %v1038 = vpop.f32.mrb[0].mxu0
        %1039 = vdwg.mxu0
        %v1040 = vsel %vm855, %v897, -inf
        %1041 = vmax.xlane.f32.xlu0 %v1040
        %v1042 = vpop.xlane.xlu0 %1041
        %v1043 = vsel %vm855, %v943, -inf
        %1044 = vmax.xlane.f32.xlu0 %v1043
        %v1045 = vpop.xlane.xlu0 %1044
        %v1046 = vsel %vm855, %v989, -inf
        %1047 = vmax.xlane.f32.xlu0 %v1046
        %v1048 = vpop.xlane.xlu0 %1047
        %v1049 = vsel %vm855, %v1035, -inf
        %1050 = vmax.xlane.f32.xlu0 %v1049
        %v1051 = vpop.xlane.xlu0 %1050
        %v1052 = vsub.f32 %v897, %v1042
        %v1053 = vsub.f32 %v943, %v1045
        %v1054 = vsub.f32 %v989, %v1048
        %v1055 = vsub.f32 %v1035, %v1051
        %v1056 = vmul.f32 %v1052, 1.442695
        %v1057 = vpow.pop %v1056
        %v1058 = vmul.f32 %v1053, 1.442695
        %v1059 = vpow.pop %v1058
        %v1060 = vmul.f32 %v1054, 1.442695
        %v1061 = vpow.pop %v1060
        %v1062 = vmul.f32 %v1055, 1.442695
        %v1063 = vpow.pop %v1062
        %v1064 = vsel %vm855, %v1057, 0.0
        %1065 = vadd.xlane.f32.xlu0 %v1064
        %v1066 = vpop.xlane.xlu0 %1065
        %v1067 = vsel %vm855, %v1059, 0.0
        %1068 = vadd.xlane.f32.xlu0 %v1067
        %v1069 = vpop.xlane.xlu0 %1068
        %v1070 = vsel %vm855, %v1061, 0.0
        %1071 = vadd.xlane.f32.xlu0 %v1070
        %v1072 = vpop.xlane.xlu0 %1071
        %v1073 = vsel %vm855, %v1063, 0.0
        %1074 = vadd.xlane.f32.xlu0 %v1073
        %v1075 = vpop.xlane.xlu0 %1074
        %v1076 = vrcp.pop %v1066
        %v1077 = vrcp.pop %v1069
        %v1078 = vrcp.pop %v1072
        %v1079 = vrcp.pop %v1075
        %v1080 = vmul.f32 %v1057, %v1076
        %v1081 = vmul.f32 %v1059, %v1077
        %v1082 = vmul.f32 %v1061, %v1078
        %v1083 = vmul.f32 %v1063, %v1079
        %v1084 = vpack.c.bf16 %v1080, %v1080
        %v1085 = vpack.c.bf16 %v1081, %v1081
        %v1086 = vpack.c.bf16 %v1082, %v1082
        %v1087 = vpack.c.bf16 %v1083, %v1083
        %v1089 = vsel %vm855, %v1084, 0
        %vm1091 = vcmask 1043456
        %v1093 = vsel %vm1091, %v845, 0
        %1095 = vmatprep.subr.bf16.mxu0 0
        %1096 = vmatpush1.bf16.msra.mxu0 %v1093
        %1097 = vmatprep.subr.bf16.mxu0 0
        %1098 = vmatpush1.bf16.msra.mxu0 0
        %1099 = vmatprep.subr.bf16.mxu0 0
        %1100 = vmatpush1.bf16.msra.mxu0 0
        %1101 = vmatprep.subr.bf16.mxu0 0
        %1102 = vmatpush1.bf16.msra.mxu0 0
        %1103 = vmatprep.subr.bf16.mxu0 0
        %1104 = vmatpush1.bf16.msra.mxu0 0
        %1105 = vmatprep.subr.bf16.mxu0 0
        %1106 = vmatpush1.bf16.msra.mxu0 0
        %1107 = vmatprep.subr.bf16.mxu0 0
        %1108 = vmatpush1.bf16.msra.mxu0 0
        %1109 = vmatprep.subr.bf16.mxu0 0
        %1110 = vmatpush1.bf16.msra.mxu0 0
        %1111 = vmatprep.subr.bf16.mxu0 0
        %1112 = vmatpush1.bf16.msra.mxu0 0
        %1113 = vmatprep.subr.bf16.mxu0 0
        %1114 = vmatpush1.bf16.msra.mxu0 0
        %1115 = vmatprep.subr.bf16.mxu0 0
        %1116 = vmatpush1.bf16.msra.mxu0 0
        %1117 = vmatprep.subr.bf16.mxu0 0
        %1118 = vmatpush1.bf16.msra.mxu0 0
        %1119 = vmatprep.subr.bf16.mxu0 0
        %1120 = vmatpush1.bf16.msra.mxu0 0
        %1121 = vmatprep.subr.bf16.mxu0 0
        %1122 = vmatpush1.bf16.msra.mxu0 0
        %1123 = vmatprep.subr.bf16.mxu0 0
        %1124 = vmatpush1.bf16.msra.mxu0 0
        %1125 = vmatprep.subr.bf16.mxu0 0
        %1126 = vmatpush1.bf16.msra.mxu0 0
        %1127 = vmatprep.mubr.bf16.mxu0 0
        %1128 = vmatmul.mubr.bf16.gmra.mrb[0].mxu0 %v1089
        %v1129 = vpop.f32.mrb[0].mxu0
        %v1130 = vadd.f32 0.0, %v1129
        %v1131 = vpop.f32.mrb[0].mxu0
        %v1132 = vpop.f32.mrb[0].mxu0
        %v1133 = vpop.f32.mrb[0].mxu0
        %1134 = vdwg.mxu0
        %v1136 = vsel %vm855, %v1085, 0
        %v1139 = vsel %vm1091, %v848, 0
        %1141 = vmatprep.subr.bf16.mxu0 0
        %1142 = vmatpush1.bf16.msra.mxu0 %v1139
        %1143 = vmatprep.subr.bf16.mxu0 0
        %1144 = vmatpush1.bf16.msra.mxu0 0
        %1145 = vmatprep.subr.bf16.mxu0 0
        %1146 = vmatpush1.bf16.msra.mxu0 0
        %1147 = vmatprep.subr.bf16.mxu0 0
        %1148 = vmatpush1.bf16.msra.mxu0 0
        %1149 = vmatprep.subr.bf16.mxu0 0
        %1150 = vmatpush1.bf16.msra.mxu0 0
        %1151 = vmatprep.subr.bf16.mxu0 0
        %1152 = vmatpush1.bf16.msra.mxu0 0
        %1153 = vmatprep.subr.bf16.mxu0 0
        %1154 = vmatpush1.bf16.msra.mxu0 0
        %1155 = vmatprep.subr.bf16.mxu0 0
        %1156 = vmatpush1.bf16.msra.mxu0 0
        %1157 = vmatprep.subr.bf16.mxu0 0
        %1158 = vmatpush1.bf16.msra.mxu0 0
        %1159 = vmatprep.subr.bf16.mxu0 0
        %1160 = vmatpush1.bf16.msra.mxu0 0
        %1161 = vmatprep.subr.bf16.mxu0 0
        %1162 = vmatpush1.bf16.msra.mxu0 0
        %1163 = vmatprep.subr.bf16.mxu0 0
        %1164 = vmatpush1.bf16.msra.mxu0 0
        %1165 = vmatprep.subr.bf16.mxu0 0
        %1166 = vmatpush1.bf16.msra.mxu0 0
        %1167 = vmatprep.subr.bf16.mxu0 0
        %1168 = vmatpush1.bf16.msra.mxu0 0
        %1169 = vmatprep.subr.bf16.mxu0 0
        %1170 = vmatpush1.bf16.msra.mxu0 0
        %1171 = vmatprep.subr.bf16.mxu0 0
        %1172 = vmatpush1.bf16.msra.mxu0 0
        %1173 = vmatprep.mubr.bf16.mxu0 0
        %1174 = vmatmul.mubr.bf16.gmra.mrb[0].mxu0 %v1136
        %v1175 = vpop.f32.mrb[0].mxu0
        %v1176 = vadd.f32 0.0, %v1175
        %v1177 = vpop.f32.mrb[0].mxu0
        %v1178 = vpop.f32.mrb[0].mxu0
        %v1179 = vpop.f32.mrb[0].mxu0
        %1180 = vdwg.mxu0
        %v1182 = vsel %vm855, %v1086, 0
        %v1185 = vsel %vm1091, %v851, 0
        %1187 = vmatprep.subr.bf16.mxu0 0
        %1188 = vmatpush1.bf16.msra.mxu0 %v1185
        %1189 = vmatprep.subr.bf16.mxu0 0
        %1190 = vmatpush1.bf16.msra.mxu0 0
        %1191 = vmatprep.subr.bf16.mxu0 0
        %1192 = vmatpush1.bf16.msra.mxu0 0
        %1193 = vmatprep.subr.bf16.mxu0 0
        %1194 = vmatpush1.bf16.msra.mxu0 0
        %1195 = vmatprep.subr.bf16.mxu0 0
        %1196 = vmatpush1.bf16.msra.mxu0 0
        %1197 = vmatprep.subr.bf16.mxu0 0
        %1198 = vmatpush1.bf16.msra.mxu0 0
        %1199 = vmatprep.subr.bf16.mxu0 0
        %1200 = vmatpush1.bf16.msra.mxu0 0
        %1201 = vmatprep.subr.bf16.mxu0 0
        %1202 = vmatpush1.bf16.msra.mxu0 0
        %1203 = vmatprep.subr.bf16.mxu0 0
        %1204 = vmatpush1.bf16.msra.mxu0 0
        %1205 = vmatprep.subr.bf16.mxu0 0
        %1206 = vmatpush1.bf16.msra.mxu0 0
        %1207 = vmatprep.subr.bf16.mxu0 0
        %1208 = vmatpush1.bf16.msra.mxu0 0
        %1209 = vmatprep.subr.bf16.mxu0 0
        %1210 = vmatpush1.bf16.msra.mxu0 0
        %1211 = vmatprep.subr.bf16.mxu0 0
        %1212 = vmatpush1.bf16.msra.mxu0 0
        %1213 = vmatprep.subr.bf16.mxu0 0
        %1214 = vmatpush1.bf16.msra.mxu0 0
        %1215 = vmatprep.subr.bf16.mxu0 0
        %1216 = vmatpush1.bf16.msra.mxu0 0
        %1217 = vmatprep.subr.bf16.mxu0 0
        %1218 = vmatpush1.bf16.msra.mxu0 0
        %1219 = vmatprep.mubr.bf16.mxu0 0
        %1220 = vmatmul.mubr.bf16.gmra.mrb[0].mxu0 %v1182
        %v1221 = vpop.f32.mrb[0].mxu0
        %v1222 = vadd.f32 0.0, %v1221
        %v1223 = vpop.f32.mrb[0].mxu0
        %v1224 = vpop.f32.mrb[0].mxu0
        %v1225 = vpop.f32.mrb[0].mxu0
        %1226 = vdwg.mxu0
        %v1228 = vsel %vm855, %v1087, 0
        %v1231 = vsel %vm1091, %v854, 0
        %1233 = vmatprep.subr.bf16.mxu0 0
        %1234 = vmatpush1.bf16.msra.mxu0 %v1231
        %1235 = vmatprep.subr.bf16.mxu0 0
        %1236 = vmatpush1.bf16.msra.mxu0 0
        %1237 = vmatprep.subr.bf16.mxu0 0
        %1238 = vmatpush1.bf16.msra.mxu0 0
        %1239 = vmatprep.subr.bf16.mxu0 0
        %1240 = vmatpush1.bf16.msra.mxu0 0
        %1241 = vmatprep.subr.bf16.mxu0 0
        %1242 = vmatpush1.bf16.msra.mxu0 0
        %1243 = vmatprep.subr.bf16.mxu0 0
        %1244 = vmatpush1.bf16.msra.mxu0 0
        %1245 = vmatprep.subr.bf16.mxu0 0
        %1246 = vmatpush1.bf16.msra.mxu0 0
        %1247 = vmatprep.subr.bf16.mxu0 0
        %1248 = vmatpush1.bf16.msra.mxu0 0
        %1249 = vmatprep.subr.bf16.mxu0 0
        %1250 = vmatpush1.bf16.msra.mxu0 0
        %1251 = vmatprep.subr.bf16.mxu0 0
        %1252 = vmatpush1.bf16.msra.mxu0 0
        %1253 = vmatprep.subr.bf16.mxu0 0
        %1254 = vmatpush1.bf16.msra.mxu0 0
        %1255 = vmatprep.subr.bf16.mxu0 0
        %1256 = vmatpush1.bf16.msra.mxu0 0
        %1257 = vmatprep.subr.bf16.mxu0 0
        %1258 = vmatpush1.bf16.msra.mxu0 0
        %1259 = vmatprep.subr.bf16.mxu0 0
        %1260 = vmatpush1.bf16.msra.mxu0 0
        %1261 = vmatprep.subr.bf16.mxu0 0
        %1262 = vmatpush1.bf16.msra.mxu0 0
        %1263 = vmatprep.subr.bf16.mxu0 0
        %1264 = vmatpush1.bf16.msra.mxu0 0
        %1265 = vmatprep.mubr.bf16.mxu0 0
        %1266 = vmatmul.mubr.bf16.gmra.mrb[0].mxu0 %v1228
        %v1267 = vpop.f32.mrb[0].mxu0
        %v1268 = vadd.f32 0.0, %v1267
        %v1269 = vpop.f32.mrb[0].mxu0
        %v1270 = vpop.f32.mrb[0].mxu0
        %v1271 = vpop.f32.mrb[0].mxu0
        %1272 = vdwg.mxu0
        %v1273 = vpack.c.bf16 %v1130, %v1130
        %v1275 = vunpack.c.l.s4 1983009808
        %v1276 = vunpack.c.0.s8 %v1275
        %v1277 = vlaneseq
        %v1278 = vshrl.u32 %v1277, 7
        %v1279 = vsub.s32 %v1276, %v1278
        %v1280 = vrot.slane %v1273, %v1279
        %v1281 = vpack.c.bf16 %v1222, %v1222
        %v1283 = vunpack.c.l.s4 1983009808
        %v1284 = vunpack.c.0.s8 %v1283
        %v1285 = vlaneseq
        %v1286 = vshrl.u32 %v1285, 7
        %v1287 = vsub.s32 %v1284, %v1286
        %v1288 = vrot.slane %v1281, %v1287
        %v1289 = vcombine.low %v1280, %v1288
        %v1290 = vcombine.high %v1280, %v1288
        %v1292 = vunpack.c.l.s4 1934713408
        %v1293 = vunpack.c.0.s8 %v1292
        %v1294 = vlaneseq
        %v1295 = vshrl.u32 %v1294, 7
        %v1296 = vsub.s32 %v1293, %v1295
        %v1297 = vrot.slane %v1289, %v1296
        %v1299 = vunpack.c.l.s4 1934713408
        %v1300 = vunpack.c.0.s8 %v1299
        %v1301 = vlaneseq
        %v1302 = vshrl.u32 %v1301, 7
        %v1303 = vsub.s32 %v1300, %v1302
        %v1304 = vrot.slane %v1290, %v1303
        %v1305 = vcombine.high %v1297, 0
        %v1306 = vcombine.high %v1304, 0
        %v1307 = vpack.c.bf16 %v1176, %v1176
        %v1309 = vunpack.c.l.s4 1983009808
        %v1310 = vunpack.c.0.s8 %v1309
        %v1311 = vlaneseq
        %v1312 = vshrl.u32 %v1311, 7
        %v1313 = vsub.s32 %v1310, %v1312
        %v1314 = vrot.slane %v1307, %v1313
        %v1315 = vpack.c.bf16 %v1268, %v1268
        %v1317 = vunpack.c.l.s4 1983009808
        %v1318 = vunpack.c.0.s8 %v1317
        %v1319 = vlaneseq
        %v1320 = vshrl.u32 %v1319, 7
        %v1321 = vsub.s32 %v1318, %v1320
        %v1322 = vrot.slane %v1315, %v1321
        %v1323 = vcombine.low %v1314, %v1322
        %v1324 = vcombine.high %v1314, %v1322
        %v1326 = vunpack.c.l.s4 1934713408
        %v1327 = vunpack.c.0.s8 %v1326
        %v1328 = vlaneseq
        %v1329 = vshrl.u32 %v1328, 7
        %v1330 = vsub.s32 %v1327, %v1329
        %v1331 = vrot.slane %v1323, %v1330
        %v1333 = vunpack.c.l.s4 1934713408
        %v1334 = vunpack.c.0.s8 %v1333
        %v1335 = vlaneseq
        %v1336 = vshrl.u32 %v1335, 7
        %v1337 = vsub.s32 %v1334, %v1336
        %v1338 = vrot.slane %v1324, %v1337
        %v1339 = vcombine.high %v1331, 0
        %v1340 = vcombine.high %v1338, 0
        %v1343 = vpack.i.b16 %v1331, %v1297
        %v1345 = vshrl.u32 %v1297, 16
        %v1346 = vshrl.u32 %v1331, 16
        %v1347 = vpack.i.b16 %v1346, %v1345
        %v1351 = vpack.i.b16 %v1339, %v1305
        %v1353 = vshrl.u32 %v1305, 16
        %v1354 = vshrl.u32 %v1339, 16
        %v1355 = vpack.i.b16 %v1354, %v1353
        %v1359 = vpack.i.b16 %v1338, %v1304
        %v1361 = vshrl.u32 %v1304, 16
        %v1362 = vshrl.u32 %v1338, 16
        %v1363 = vpack.i.b16 %v1362, %v1361
        %v1367 = vpack.i.b16 %v1340, %v1306
        %v1369 = vshrl.u32 %v1306, 16
        %v1370 = vshrl.u32 %v1340, 16
        %v1371 = vpack.i.b16 %v1370, %v1369
        %v1373 = vcombine.low %v1343, %v1359
        %v1375 = vunpack.c.l.s4 1983009808
        %v1376 = vunpack.c.0.s8 %v1375
        %v1377 = vlaneseq
        %v1378 = vshrl.u32 %v1377, 7
        %v1379 = vsub.s32 %v1376, %v1378
        %v1380 = vrot.slane %v1373, %v1379
        %v1381 = vcombine.low %v1351, %v1367
        %v1383 = vunpack.c.l.s4 1983009808
        %v1384 = vunpack.c.0.s8 %v1383
        %v1385 = vlaneseq
        %v1386 = vshrl.u32 %v1385, 7
        %v1387 = vsub.s32 %v1384, %v1386
        %v1388 = vrot.slane %v1381, %v1387
        %v1389 = vcombine.low %v1380, %v1388
        %v1391 = vunpack.c.l.s4 1934713408
        %v1392 = vunpack.c.0.s8 %v1391
        %v1393 = vlaneseq
        %v1394 = vshrl.u32 %v1393, 7
        %v1395 = vsub.s32 %v1392, %v1394
        %v1396 = vrot.slane %v1389, %v1395
        %v1397 = vcombine.high %v1396, 0
        %v1398 = vcombine.low %v1347, %v1363
        %v1400 = vunpack.c.l.s4 1983009808
        %v1401 = vunpack.c.0.s8 %v1400
        %v1402 = vlaneseq
        %v1403 = vshrl.u32 %v1402, 7
        %v1404 = vsub.s32 %v1401, %v1403
        %v1405 = vrot.slane %v1398, %v1404
        %v1406 = vcombine.low %v1355, %v1371
        %v1408 = vunpack.c.l.s4 1983009808
        %v1409 = vunpack.c.0.s8 %v1408
        %v1410 = vlaneseq
        %v1411 = vshrl.u32 %v1410, 7
        %v1412 = vsub.s32 %v1409, %v1411
        %v1413 = vrot.slane %v1406, %v1412
        %v1414 = vcombine.low %v1405, %v1413
        %v1416 = vunpack.c.l.s4 1934713408
        %v1417 = vunpack.c.0.s8 %v1416
        %v1418 = vlaneseq
        %v1419 = vshrl.u32 %v1418, 7
        %v1420 = vsub.s32 %v1417, %v1419
        %v1421 = vrot.slane %v1414, %v1420
        %v1422 = vcombine.high %v1421, 0
        %v1425 = vpack.i.b16 %v1421, %v1396
        %v1426 = vshrl.u32 %v1396, 16
        %v1427 = vshrl.u32 %v1421, 16
        %v1428 = vpack.i.b16 %v1427, %v1426
        %v1431 = vpack.i.b16 %v1422, %v1397
        %v1432 = vshrl.u32 %v1397, 16
        %v1433 = vshrl.u32 %v1422, 16
        %v1434 = vpack.i.b16 %v1433, %v1432
        %1435 = vrot.lane.b32.xlu0 %v1428, 8
        %v1436 = vpop.permute.xlu0 %1435
        %1437 = vrot.lane.b32.xlu0 %v1431, 16
        %v1438 = vpop.permute.xlu0 %1437
        %1439 = vrot.lane.b32.xlu0 %v1434, 24
        %v1440 = vpop.permute.xlu0 %1439
        %v1443 = vsel %vm855, %v1425, %v1436
        %vm1444 = vcmask 130048
        %v1446 = vsel %vm1444, %v1443, %v1438
        %vm1447 = vcmask 195584
        %v1449 = vsel %vm1447, %v1446, %v1440
        %v1450 = vld [vmem:[%s4] sm:$0xf]
        %v1451 = vld [vmem:[%s4 + $0x4] sm:$0xf]
        %v1452 = vld [vmem:[%s4 + $0x8] sm:$0xf]
        %v1453 = vld [vmem:[%s4 + $0xc] sm:$0xf]
        %v1454 = vld [vmem:[%s5] sm:$0x1]
        %v1456 = vlaneseq
        %v1457 = vshrl.u32 %v1456, 7
        %v1458 = vsub.s32 0, %v1457
        %v1459 = vrot.slane %v1454, %v1458
        %v1465 = vunpack.c.l.b16 %v1450
        %v1466 = vunpack.c.l.b16 %v1451
        %v1467 = vunpack.c.l.b16 %v1452
        %v1468 = vunpack.c.l.b16 %v1453
        %v1469 = vpack.c.b16 %v1466, %v1465
        %v1470 = vpack.c.b16 %v1468, %v1467
        %v1473 = vsel %vm411, %v1449, 0
        %1475 = vmatprep.subr.bf16.mxu0 0
        %1476 = vmatpush1.bf16.msra.mxu0 %v1469
        %1477 = vmatprep.subr.bf16.mxu0 0
        %1478 = vmatpush1.bf16.msra.mxu0 %v1470
        %1479 = vmatprep.subr.bf16.mxu0 0
        %1480 = vmatpush1.bf16.msra.mxu0 0
        %1481 = vmatprep.subr.bf16.mxu0 0
        %1482 = vmatpush1.bf16.msra.mxu0 0
        %1483 = vmatprep.subr.bf16.mxu0 0
        %1484 = vmatpush1.bf16.msra.mxu0 0
        %1485 = vmatprep.subr.bf16.mxu0 0
        %1486 = vmatpush1.bf16.msra.mxu0 0
        %1487 = vmatprep.subr.bf16.mxu0 0
        %1488 = vmatpush1.bf16.msra.mxu0 0
        %1489 = vmatprep.subr.bf16.mxu0 0
        %1490 = vmatpush1.bf16.msra.mxu0 0
        %1491 = vmatprep.subr.bf16.mxu0 0
        %1492 = vmatpush1.bf16.msra.mxu0 0
        %1493 = vmatprep.subr.bf16.mxu0 0
        %1494 = vmatpush1.bf16.msra.mxu0 0
        %1495 = vmatprep.subr.bf16.mxu0 0
        %1496 = vmatpush1.bf16.msra.mxu0 0
        %1497 = vmatprep.subr.bf16.mxu0 0
        %1498 = vmatpush1.bf16.msra.mxu0 0
        %1499 = vmatprep.subr.bf16.mxu0 0
        %1500 = vmatpush1.bf16.msra.mxu0 0
        %1501 = vmatprep.subr.bf16.mxu0 0
        %1502 = vmatpush1.bf16.msra.mxu0 0
        %1503 = vmatprep.subr.bf16.mxu0 0
        %1504 = vmatpush1.bf16.msra.mxu0 0
        %1505 = vmatprep.subr.bf16.mxu0 0
        %1506 = vmatpush1.bf16.msra.mxu0 0
        %1507 = vmatprep.mubr.bf16.mxu0 0
        %1508 = vmatmul.mubr.bf16.gmra.mrb[0].mxu0 %v1473
        %v1509 = vpop.f32.mrb[0].mxu0
        %v1510 = vadd.f32 %v1459, %v1509
        %v1511 = vpop.f32.mrb[0].mxu0
        %v1512 = vpop.f32.mrb[0].mxu0
        %v1513 = vpop.f32.mrb[0].mxu0
        %1514 = vdwg.mxu0
        %v1515 = vadd.f32 %v410, %v1510
        %v1516 = vsel %vm411, %v1515, 0.0
        %1517 = vadd.xlane.f32.xlu0 %v1516
        %v1518 = vpop.xlane.xlu0 %1517
        %v1519 = vmul.f32 %v1518, %v415
        %v1520 = vsub.f32 %v1515, %v1519
        %v1521 = vmul.f32 %v1520, %v1520
        %v1522 = vsel %vm411, %v1521, 0.0
        %1523 = vadd.xlane.f32.xlu0 %v1522
        %v1524 = vpop.xlane.xlu0 %1523
        %v1525 = vmul.f32 %v1524, %v415
        %v1526 = vadd.f32 %v1525, 1e-05
        %v1527 = vrsqrt.pop %v1526
        %v1528 = vmul.f32 %v1520, %v1527
        %v1529 = vld [vmem:[%s6] sm:$0x1]
        %v1531 = vlaneseq
        %v1532 = vshrl.u32 %v1531, 7
        %v1533 = vsub.s32 0, %v1532
        %v1534 = vrot.slane %v1529, %v1533
        %v1536 = vmul.f32 %v1528, %v1534
        %v1537 = vld [vmem:[%s7] sm:$0x1]
        %v1539 = vlaneseq
        %v1540 = vshrl.u32 %v1539, 7
        %v1541 = vsub.s32 0, %v1540
        %v1542 = vrot.slane %v1537, %v1541
        %v1544 = vadd.f32 %v1536, %v1542
        %v1545 = vpack.c.bf16 %v1544, %v1544
        %v1546 = vld [vmem:[%s8] sm:$0xf]
        %v1547 = vld [vmem:[%s8 + $0x4] sm:$0xf]
        %v1548 = vld [vmem:[%s8 + $0x8] sm:$0xf]
        %v1549 = vld [vmem:[%s8 + $0xc] sm:$0xf]
        %v1550 = vld [vmem:[%s9] sm:$0x1]
        %v1552 = vlaneseq
        %v1553 = vshrl.u32 %v1552, 7
        %v1554 = vsub.s32 0, %v1553
        %v1555 = vrot.slane %v1550, %v1554
        %v1561 = vunpack.c.l.b16 %v1546
        %v1562 = vunpack.c.l.b16 %v1547
        %v1563 = vunpack.c.l.b16 %v1548
        %v1564 = vunpack.c.l.b16 %v1549
        %v1565 = vpack.c.b16 %v1562, %v1561
        %v1566 = vpack.c.b16 %v1564, %v1563
        %v1570 = vsel %vm411, %v1545, 0
        %1572 = vmatprep.subr.bf16.mxu0 0
        %1573 = vmatpush1.bf16.msra.mxu0 %v1565
        %1574 = vmatprep.subr.bf16.mxu0 0
        %1575 = vmatpush1.bf16.msra.mxu0 %v1566
        %1576 = vmatprep.subr.bf16.mxu0 0
        %1577 = vmatpush1.bf16.msra.mxu0 0
        %1578 = vmatprep.subr.bf16.mxu0 0
        %1579 = vmatpush1.bf16.msra.mxu0 0
        %1580 = vmatprep.subr.bf16.mxu0 0
        %1581 = vmatpush1.bf16.msra.mxu0 0
        %1582 = vmatprep.subr.bf16.mxu0 0
        %1583 = vmatpush1.bf16.msra.mxu0 0
        %1584 = vmatprep.subr.bf16.mxu0 0
        %1585 = vmatpush1.bf16.msra.mxu0 0
        %1586 = vmatprep.subr.bf16.mxu0 0
        %1587 = vmatpush1.bf16.msra.mxu0 0
        %1588 = vmatprep.subr.bf16.mxu0 0
        %1589 = vmatpush1.bf16.msra.mxu0 0
        %1590 = vmatprep.subr.bf16.mxu0 0
        %1591 = vmatpush1.bf16.msra.mxu0 0
        %1592 = vmatprep.subr.bf16.mxu0 0
        %1593 = vmatpush1.bf16.msra.mxu0 0
        %1594 = vmatprep.subr.bf16.mxu0 0
        %1595 = vmatpush1.bf16.msra.mxu0 0
        %1596 = vmatprep.subr.bf16.mxu0 0
        %1597 = vmatpush1.bf16.msra.mxu0 0
        %1598 = vmatprep.subr.bf16.mxu0 0
        %1599 = vmatpush1.bf16.msra.mxu0 0
        %1600 = vmatprep.subr.bf16.mxu0 0
        %1601 = vmatpush1.bf16.msra.mxu0 0
        %1602 = vmatprep.subr.bf16.mxu0 0
        %1603 = vmatpush1.bf16.msra.mxu0 0
        %1604 = vmatprep.mubr.bf16.mxu0 0
        %1605 = vmatmul.mubr.bf16.gmra.mrb[0].mxu0 %v1570
        %v1606 = vpop.f32.mrb[0].mxu0
        %v1607 = vadd.f32 %v1555, %v1606
        %v1608 = vpop.f32.mrb[0].mxu0
        %v1609 = vpop.f32.mrb[0].mxu0
        %v1610 = vpop.f32.mrb[0].mxu0
        %1611 = vdwg.mxu0
        %v1612 = vmax.f32 %v1607, 0.0
        %v1613 = vpack.c.bf16 %v1612, %v1612
        %v1614 = vld [vmem:[%s10] sm:$0xf]
        %v1615 = vld [vmem:[%s10 + $0x4] sm:$0xf]
        %v1616 = vld [vmem:[%s10 + $0x8] sm:$0xf]
        %v1617 = vld [vmem:[%s10 + $0xc] sm:$0xf]
        %v1618 = vld [vmem:[%s10 + $0x10] sm:$0xf]
        %v1619 = vld [vmem:[%s10 + $0x14] sm:$0xf]
        %v1620 = vld [vmem:[%s10 + $0x18] sm:$0xf]
        %v1621 = vld [vmem:[%s10 + $0x1c] sm:$0xf]
        %v1622 = vld [vmem:[%s10 + $0x20] sm:$0xf]
        %v1623 = vld [vmem:[%s10 + $0x24] sm:$0xf]
        %v1624 = vld [vmem:[%s10 + $0x28] sm:$0xf]
        %v1625 = vld [vmem:[%s10 + $0x2c] sm:$0xf]
        %v1626 = vld [vmem:[%s10 + $0x30] sm:$0xf]
        %v1627 = vld [vmem:[%s10 + $0x34] sm:$0xf]
        %v1628 = vld [vmem:[%s10 + $0x38] sm:$0xf]
        %v1629 = vld [vmem:[%s10 + $0x3c] sm:$0xf]
        %v1630 = vld [vmem:[%s11] sm:$0x1]
        %v1632 = vlaneseq
        %v1633 = vshrl.u32 %v1632, 7
        %v1634 = vsub.s32 0, %v1633
        %v1635 = vrot.slane %v1630, %v1634
        %v1653 = vunpack.c.l.b16 %v1614
        %v1654 = vunpack.c.l.b16 %v1615
        %v1655 = vunpack.c.l.b16 %v1616
        %v1656 = vunpack.c.l.b16 %v1617
        %v1657 = vunpack.c.l.b16 %v1618
        %v1658 = vunpack.c.l.b16 %v1619
        %v1659 = vunpack.c.l.b16 %v1620
        %v1660 = vunpack.c.l.b16 %v1621
        %v1661 = vunpack.c.l.b16 %v1622
        %v1662 = vunpack.c.l.b16 %v1623
        %v1663 = vunpack.c.l.b16 %v1624
        %v1664 = vunpack.c.l.b16 %v1625
        %v1665 = vunpack.c.l.b16 %v1626
        %v1666 = vunpack.c.l.b16 %v1627
        %v1667 = vunpack.c.l.b16 %v1628
        %v1668 = vunpack.c.l.b16 %v1629
        %v1669 = vpack.c.b16 %v1654, %v1653
        %v1670 = vpack.c.b16 %v1656, %v1655
        %v1671 = vpack.c.b16 %v1658, %v1657
        %v1672 = vpack.c.b16 %v1660, %v1659
        %v1673 = vpack.c.b16 %v1662, %v1661
        %v1674 = vpack.c.b16 %v1664, %v1663
        %v1675 = vpack.c.b16 %v1666, %v1665
        %v1676 = vpack.c.b16 %v1668, %v1667
        %1685 = vmatprep.subr.bf16.mxu0 0
        %1686 = vmatpush1.bf16.msra.mxu0 %v1669
        %1687 = vmatprep.subr.bf16.mxu0 0
        %1688 = vmatpush1.bf16.msra.mxu0 %v1670
        %1689 = vmatprep.subr.bf16.mxu0 0
        %1690 = vmatpush1.bf16.msra.mxu0 %v1671
        %1691 = vmatprep.subr.bf16.mxu0 0
        %1692 = vmatpush1.bf16.msra.mxu0 %v1672
        %1693 = vmatprep.subr.bf16.mxu0 0
        %1694 = vmatpush1.bf16.msra.mxu0 %v1673
        %1695 = vmatprep.subr.bf16.mxu0 0
        %1696 = vmatpush1.bf16.msra.mxu0 %v1674
        %1697 = vmatprep.subr.bf16.mxu0 0
        %1698 = vmatpush1.bf16.msra.mxu0 %v1675
        %1699 = vmatprep.subr.bf16.mxu0 0
        %1700 = vmatpush1.bf16.msra.mxu0 %v1676
        %1701 = vmatprep.subr.bf16.mxu0 0
        %1702 = vmatpush1.bf16.msra.mxu0 0
        %1703 = vmatprep.subr.bf16.mxu0 0
        %1704 = vmatpush1.bf16.msra.mxu0 0
        %1705 = vmatprep.subr.bf16.mxu0 0
        %1706 = vmatpush1.bf16.msra.mxu0 0
        %1707 = vmatprep.subr.bf16.mxu0 0
        %1708 = vmatpush1.bf16.msra.mxu0 0
        %1709 = vmatprep.subr.bf16.mxu0 0
        %1710 = vmatpush1.bf16.msra.mxu0 0
        %1711 = vmatprep.subr.bf16.mxu0 0
        %1712 = vmatpush1.bf16.msra.mxu0 0
        %1713 = vmatprep.subr.bf16.mxu0 0
        %1714 = vmatpush1.bf16.msra.mxu0 0
        %1715 = vmatprep.subr.bf16.mxu0 0
        %1716 = vmatpush1.bf16.msra.mxu0 0
        %1717 = vmatprep.mubr.bf16.mxu0 0
        %1718 = vmatmul.mubr.bf16.gmra.mrb[0].mxu0 %v1613
        %v1719 = vpop.f32.mrb[0].mxu0
        %v1720 = vadd.f32 %v1635, %v1719
        %v1721 = vpop.f32.mrb[0].mxu0
        %v1722 = vpop.f32.mrb[0].mxu0
        %v1723 = vpop.f32.mrb[0].mxu0
        %1724 = vdwg.mxu0
        %v1725 = vadd.f32 %v1515, %v1720
        %1726 = vst.msk [vmem:[%s404] sm:$0xff] %vm411, %v1725
        %s1727 = sand.u32 %s291, 1
        %s1728 = scalar_lea.sflag [#allocation3], %s1727
        %s1729 = sand.u32 %s291, 1
        %s1730 = smul.addr %s1729, 8
        %s1731 = scalar_lea.vmem [#allocation2], %s1730
        // Predicated region
        $region69: #{tpu_custom_call.1} parent=67 // pred_check
          %p1732 = pneg %p301
        $region70: #{tpu_custom_call.1} parent=67 // pred_check_branch
          %1734 = sbr.rel (%p1732) target = $region72
        $region71: #{tpu_custom_call.1} parent=67 // pred_region
          %s1736 = ssub.s32 128, 128
          %1737 = vsyncadd %s1728, %s1736
          %s1738 = smul.addr %s26, 128
          %s1739 = scalar_lea.hbm %s12, %s1738
          %s1741 = sshll.u32 %s1731, 4
          %s1742 = int_to_ptr.vmem [resolvable:$true] %s1741
          %1744 = dma.vmem_to_hbm [thread:$0]  %s1742, 128, %s1739, %s1728
        $region72: #{tpu_custom_call.1} parent=67 // pred_fallthru
          _
      $region68: #{tpu_custom_call.1} parent=5 // pred_fallthru
        _
      %p1745 = scmp.le.s32.totalorder 2, %s21
      // Predicated region
      $region73: #{tpu_custom_call.1} parent=5 // pred_check
        %p1746 = pneg %p1745
      $region74: #{tpu_custom_call.1} parent=5 // pred_check_branch
        %1748 = sbr.rel (%p1746) target = $region76
      $region75: #{tpu_custom_call.1} parent=5 // pred_region
        %s1749 = ssub.s32 %s21, 2
        // Predicated region
        $region77: #{tpu_custom_call.1} parent=75 // pred_check
          %p1750 = pneg %p307
        $region78: #{tpu_custom_call.1} parent=75 // pred_check_branch
          %1752 = sbr.rel (%p1750) target = $region80
        $region79: #{tpu_custom_call.1} parent=75 // pred_region
          %s1753 = sand.u32 %s292, 1
          %s1754 = scalar_lea.sflag [#allocation3], %s1753
          %s1755 = sand.u32 %s292, 1
          %s1756 = smul.addr %s1755, 8
          %s1757 = scalar_lea.vmem [#allocation2], %s1756
          %1758 = dma.done %s1754, 128
        $region80: #{tpu_custom_call.1} parent=75 // pred_fallthru
          _
      $region76: #{tpu_custom_call.1} parent=5 // pred_fallthru
        _
    $region6: #{tpu_custom_call.1} parent=1 // loop_footer
      %s25 = sadd.s32 1, %s21
    $region7: #{tpu_custom_call.1} parent=1 // loop_footer_branch
      %20 = sbr.rel target = $region3
    $region8: #{tpu_custom_call.1} parent=1 // loop_exit
      _
    %1759 = vsyncpa [#allocation3], 1
    %s1760 = scalar_lea.sflag [#allocation3], 1
    %1761 = vsyncpa %s1760, 1

</llo_original>
